<compile_context>
chip_gen: v6e
topology: v6e:2x2x1
jax: 0.10.0
libtpu: 0.0.40
codegen_flags: <defaults>
</compile_context>

<pallas_src>
import functools

import jax
import jax.numpy as jnp
from jax import lax
from jax.experimental import pallas as pl
from jax.experimental.pallas import tpu as pltpu


def mtem_kernel(x_ref, emb_ref, w_ih_ref, w_hh_ref, b_lstm_ref,
                w1a_ref, w2_ref, b2_ref, out_ref, xg_ref, *, unroll):
    """One batch tile of the MultiTaskEnergyModel forward pass.

    x_ref    : (T, TB) f32 (Din==1, squeezed) or (T, TB, Din)
    emb_ref  : (TB, 64) f32   -- region/indicator embeddings already folded through w1 (+ b1)
    w_ih_ref : (Din, 4H) f32  -- gate cols permuted to (i,f,o,g), g cols pre-scaled by 2
    w_hh_ref : (H, 4H) bf16   -- same permute / scale
    b_lstm_ref: (1, 4H) f32   -- same permute / scale (b_ih + b_hh)
    w1a_ref  : (H, 64) bf16   -- lstm-feature rows of regressor layer 1
    w2_ref   : (1, 64) f32    -- final Linear(64,1) weight as a row
    b2_ref   : (1, 1) f32
    out_ref  : (1, TB) f32    -- lane-dense output row
    xg_ref   : (T, TB, 4H) f32 VMEM scratch for the hoisted input projection
    """
    if x_ref.ndim == 2:
        T, TB = x_ref.shape
        Din = 1
    else:
        T, TB, Din = x_ref.shape
    H = w_hh_ref.shape[0]
    bf = w_hh_ref.dtype                                     # bfloat16

    w_ih = w_ih_ref[...]                                     # (Din, 4H) f32
    w_hh = w_hh_ref[...]                                     # (H, 4H)   bf16
    b_lstm = b_lstm_ref[...]                                 # (1, 4H)   f32

    # ---- hoisted input projection + bias (out of the serial h->h chain) ----
    if Din == 1:
        xg_ref[...] = (x_ref[...][:, :, None] * w_ih.reshape(1, 1, 4 * H)
                       + b_lstm.reshape(1, 1, 4 * H))
    else:
        w_ih_bf = w_ih.astype(bf)
        for t in range(T):                                   # static, T is small
            xg_ref[t] = (jnp.dot(x_ref[t].astype(bf), w_ih_bf,
                                 preferred_element_type=jnp.float32) + b_lstm)

    # ---- serial LSTM recurrence: one bf16 matmul + one full-width sigmoid per step ----
    def step(t, carry):
        h, c = carry
        gates = xg_ref[t] + jnp.dot(h.astype(bf), w_hh,
                                    preferred_element_type=jnp.float32)
        sig = jax.nn.sigmoid(gates)                          # lane-aligned 4H-wide EUP op
        i_g = sig[:, 0 * H:1 * H]
        f_g = sig[:, 1 * H:2 * H]
        o_g = sig[:, 2 * H:3 * H]
        g_g = 2.0 * sig[:, 3 * H:4 * H] - 1.0                # tanh(z) = 2*sigmoid(2z) - 1
        c_new = f_g * c + i_g * g_g
        h_new = o_g * jnp.tanh(c_new)
        return h_new, c_new

    h0 = jnp.zeros((TB, H), jnp.float32)
    c0 = jnp.zeros((TB, H), jnp.float32)
    h_last, _ = lax.fori_loop(0, T, step, (h0, c0), unroll=unroll)

    # ---- regressor layer 1: embeddings already folded through w1 outside the kernel ----
    hid = (jnp.dot(h_last.astype(w1a_ref.dtype), w1a_ref[...],
                   preferred_element_type=jnp.float32)
           + emb_ref[...])                                   # (TB, 64)
    hid = jnp.maximum(hid, 0.0)                              # ReLU

    # ---- final Linear(64,1), emitted lane-dense: (1,64) x (TB,64)^T -> (1,TB) ----
    out_row = lax.dot_general(w2_ref[...], hid,
                              dimension_numbers=(((1,), (1,)), ((), ())),
                              preferred_element_type=jnp.float32) + b2_ref[...]
    out_ref[...] = out_row.astype(out_ref.dtype)


def init_params(key,
                input_dim=1, lstm_hidden=64,
                region_vocab_size=1600, region_embed_dim=32,
                indicator_vocab_size=90, indicator_embed_dim=16):
    ks = jax.random.split(key, 9)
    H = lstm_hidden
    feat_dim = lstm_hidden + region_embed_dim + indicator_embed_dim
    s = 0.1
    params = {
        # LSTM weights, pre-transposed to (in, out); PyTorch gate order (i,f,g,o);
        # combined bias = b_ih + b_hh.
        "w_ih": jax.random.normal(ks[0], (input_dim, 4 * H), jnp.float32) * s,
        "w_hh": jax.random.normal(ks[1], (H, 4 * H), jnp.float32) * s,
        "b_lstm": jax.random.normal(ks[2], (1, 4 * H), jnp.float32) * s,
        # Embedding tables
        "region_emb": jax.random.normal(ks[3], (region_vocab_size, region_embed_dim),
                                        jnp.float32) * s,
        "indicator_emb": jax.random.normal(ks[4], (indicator_vocab_size, indicator_embed_dim),
                                           jnp.float32) * s,
        # Regressor: Linear(feat_dim, 64) -> ReLU -> Linear(64, 1)
        "w1": jax.random.normal(ks[5], (feat_dim, 64), jnp.float32) * s,
        "b1": jax.random.normal(ks[6], (1, 64), jnp.float32) * s,
        "w2": jax.random.normal(ks[7], (64, 1), jnp.float32) * s,
        "b2": jax.random.normal(ks[8], (1, 1), jnp.float32) * s,
        # raw_task_weights only feeds the task_weights property (loss weighting),
        # not the forward pass; kept for completeness.
        "raw_task_weights": jnp.ones((indicator_vocab_size,), jnp.float32),
    }
    return params


def _permute_and_scale_gates(w):
    """Permute packed LSTM gate columns from PyTorch (i,f,g,o) to kernel (i,f,o,g)
    and pre-scale the g block by 2 (so one full-width sigmoid + 2*s-1 fixup == tanh)."""
    i, f, g, o = jnp.split(w, 4, axis=-1)
    return jnp.concatenate([i, f, o, 2.0 * g], axis=-1)


def _is_v7x():
    try:
        return "v7" in jax.devices()[0].device_kind.lower()
    except Exception:
        return False


def _pick_batch_tile(B):
    """Largest lane-dense (multiple-of-128) power-of-two tile dividing B, capped at 1024.
    On v7x keep >= 2 tiles so the 'parallel' grid axis feeds both TensorCores.
    Falls back to TB = B (block == full array => (8,128) rule satisfied)."""
    cap = min(B, 1024)
    if _is_v7x() and B >= 256:
        cap = min(cap, B // 2)
    for tb in (1024, 512, 256, 128):
        if tb <= cap and B % tb == 0:
            return tb
    return B


def multi_task_energy_forward(params, x_seq, region_id, indicator_id):
    """x_seq: (B, T, Din) f32; region_id/indicator_id: (B,) int32 -> (B,) f32."""
    B, T, Din = x_seq.shape
    H = params["w_hh"].shape[0]
    Er = params["region_emb"].shape[1]
    Ei = params["indicator_emb"].shape[1]

    # ---- one-off weight prep (plain XLA, constant-foldable for fixed params) ----
    w_ih = _permute_and_scale_gates(params["w_ih"])                      # (Din, 4H) f32
    w_hh = _permute_and_scale_gates(params["w_hh"]).astype(jnp.bfloat16)  # (H, 4H)
    b_lstm = _permute_and_scale_gates(params["b_lstm"])                  # (1, 4H) f32
    w1 = params["w1"]
    w1a = w1[:H].astype(jnp.bfloat16)                                    # (H, 64)
    # Fold both embedding tables through regressor layer 1, gather, add b1.
    region_proj = params["region_emb"] @ w1[H:H + Er]                    # (Rv, 64)
    ind_proj = params["indicator_emb"] @ w1[H + Er:]                     # (Iv, 64)
    emb_proj = (region_proj[region_id] + ind_proj[indicator_id]
                + params["b1"]).astype(jnp.float32)                      # (B, 64)
    w2_row = params["w2"].T.astype(jnp.float32)                          # (1, 64)
    b2 = params["b2"].astype(jnp.float32)                                # (1, 1)

    x_tm = jnp.transpose(x_seq, (1, 0, 2))                               # (T, B, Din)

    TB = _pick_batch_tile(B)
    grid = (B // TB,)
    unroll = T if TB <= 256 else min(T, 2)     # limit live ranges at big tiles

    if Din == 1:
        x_in = x_tm[:, :, 0]                                             # (T, B) lane-dense
        x_block = pl.BlockSpec((T, TB), lambda i: (0, i))
    else:
        x_in = x_tm
        x_block = pl.BlockSpec((T, TB, Din), lambda i: (0, i, 0))

    def full_spec(arr):
        nd = arr.ndim
        return pl.BlockSpec(arr.shape, lambda i, nd=nd: (0,) * nd)

    cost = pl.CostEstimate(
        flops=int(2 * T * B * H * 4 * H + 2 * T * B * Din * 4 * H
                  + 2 * B * H * 64 + 2 * B * 64),
        transcendentals=int(T * B * 5 * H),
        bytes_accessed=int(4 * (x_in.size + emb_proj.size + w_ih.size + b_lstm.size
                                + w2_row.size + b2.size + B)
                           + 2 * (w_hh.size + w1a.size)),
    )

    vmem_need = 4 * (T * TB * 4 * H              # xg scratch (f32)
                     + 2 * T * TB * max(Din, 1)  # double-buffered x blocks
                     + 2 * TB * 64 + 2 * TB      # emb + out blocks
                     + 8 * TB * 4 * H)           # live gate / step temporaries
    vmem_limit = int(min(max(vmem_need + (8 << 20), 32 << 20), 64 << 20))

    out = pl.pallas_call(
        functools.partial(mtem_kernel, unroll=unroll),
        out_shape=jax.ShapeDtypeStruct((1, B), jnp.float32),
        grid=grid,
        in_specs=[
            x_block,                                          # x, tiled over batch lanes
            pl.BlockSpec((TB, 64), lambda i: (i, 0)),         # folded embedding projection
            full_spec(w_ih), full_spec(w_hh), full_spec(b_lstm),
            full_spec(w1a), full_spec(w2_row), full_spec(b2),
        ],
        out_specs=pl.BlockSpec((1, TB), lambda i: (0, i)),    # lane-dense output row
        scratch_shapes=[pltpu.VMEM((T, TB, 4 * H), jnp.float32)],
        compiler_params=pltpu.CompilerParams(
            dimension_semantics=("parallel",),
            vmem_limit_bytes=vmem_limit),
        cost_estimate=cost,
    )(x_in, emb_proj, w_ih, w_hh, b_lstm, w1a, w2_row, b2)
    return out[0]                                             # (B,)


def _reference_forward(params, x_seq, region_id, indicator_id):
    """Pure-JAX f32 reference matching nn.LSTM + Linear semantics (i,f,g,o order)."""
    B, T, Din = x_seq.shape
    H = params["w_hh"].shape[0]
    w_ih, w_hh, b = params["w_ih"], params["w_hh"], params["b_lstm"][0]

    def cell(carry, x_t):
        h, c = carry
        gates = x_t @ w_ih + h @ w_hh + b
        i = jax.nn.sigmoid(gates[:, 0 * H:1 * H])
        f = jax.nn.sigmoid(gates[:, 1 * H:2 * H])
        g = jnp.tanh(gates[:, 2 * H:3 * H])
        o = jax.nn.sigmoid(gates[:, 3 * H:4 * H])
        c = f * c + i * g
        h = o * jnp.tanh(c)
        return (h, c), None

    (h_last, _), _ = lax.scan(
        cell, (jnp.zeros((B, H), jnp.float32), jnp.zeros((B, H), jnp.float32)),
        jnp.transpose(x_seq, (1, 0, 2)))
    feats = jnp.concatenate([h_last,
                             params["region_emb"][region_id],
                             params["indicator_emb"][indicator_id]], axis=-1)
    hid = jnp.maximum(feats @ params["w1"] + params["b1"], 0.0)
    return (hid @ params["w2"] + params["b2"])[:, 0]


if __name__ == "__main__":
    key = jax.random.PRNGKey(0)
    pkey, xkey, rkey, ikey = jax.random.split(key, 4)

    # Small, forward-consistent shapes: batch=4, seq=8, input_dim=1
    B, T, Din = 4, 8, 1
    params = init_params(pkey)

    x_seq = jax.random.normal(xkey, (B, T, Din), jnp.float32)
    region_id = jax.random.randint(rkey, (B,), 0, 1600, jnp.int32)
    indicator_id = jax.random.randint(ikey, (B,), 0, 90, jnp.int32)

    out = multi_task_energy_forward(params, x_seq, region_id, indicator_id)
    out = jax.block_until_ready(out)
    assert out.shape == (B,), out.shape

    # Loose tolerance: kernel uses bf16 matmul operands with f32 accumulation.
    ref = jax.block_until_ready(_reference_forward(params, x_seq, region_id, indicator_id))
    assert jnp.allclose(out, ref, atol=5e-2, rtol=5e-2), (out, ref)

    print("KERNEL_OK")
</pallas_src>

<mosaic_0001>
module attributes {stable_mosaic.version = 11 : i64} {
  func.func @mtem_kernel(%arg0: i32, %arg1: memref<8x4xf32, #tpu.memory_space<vmem>>, %arg2: memref<4x64xf32, #tpu.memory_space<vmem>>, %arg3: memref<1x256xf32, #tpu.memory_space<vmem>>, %arg4: memref<64x256xbf16, #tpu.memory_space<vmem>>, %arg5: memref<1x256xf32, #tpu.memory_space<vmem>>, %arg6: memref<64x64xbf16, #tpu.memory_space<vmem>>, %arg7: memref<1x64xf32, #tpu.memory_space<vmem>>, %arg8: memref<1x1xf32, #tpu.memory_space<vmem>>, %arg9: memref<1x4xf32, #tpu.memory_space<vmem>>, %arg10: memref<8x4x256xf32, #tpu.memory_space<vmem>>) attributes {dimension_semantics = [#tpu.dimension_semantics<parallel>], iteration_bounds = array<i64: 1>, scalar_prefetch = 0 : i64, scratch_operands = 1 : i64, tpu.core_type = #tpu.core_type<tc>, window_params = [{transform_indices = @transform_0, window_bounds = array<i64: 8, 4>}, {transform_indices = @transform_1, window_bounds = array<i64: 4, 64>}, {pipeline_mode = #tpu.pipeline_mode<synchronous>, transform_indices = @transform_2, window_bounds = array<i64: 1, 256>}, {pipeline_mode = #tpu.pipeline_mode<synchronous>, transform_indices = @transform_3, window_bounds = array<i64: 64, 256>}, {pipeline_mode = #tpu.pipeline_mode<synchronous>, transform_indices = @transform_4, window_bounds = array<i64: 1, 256>}, {pipeline_mode = #tpu.pipeline_mode<synchronous>, transform_indices = @transform_5, window_bounds = array<i64: 64, 64>}, {pipeline_mode = #tpu.pipeline_mode<synchronous>, transform_indices = @transform_6, window_bounds = array<i64: 1, 64>}, {pipeline_mode = #tpu.pipeline_mode<synchronous>, transform_indices = @transform_7, window_bounds = array<i64: 1, 1>}, {transform_indices = @transform_8, window_bounds = array<i64: 1, 4>}]} {
    %c0 = arith.constant 0 : index
    %c0_0 = arith.constant 0 : index
    %0 = vector.load %arg3[%c0, %c0_0] : memref<1x256xf32, #tpu.memory_space<vmem>>, vector<1x256xf32>
    %c0_1 = arith.constant 0 : index
    %c0_2 = arith.constant 0 : index
    %1 = vector.load %arg4[%c0_1, %c0_2] : memref<64x256xbf16, #tpu.memory_space<vmem>>, vector<64x256xbf16>
    %c0_3 = arith.constant 0 : index
    %c0_4 = arith.constant 0 : index
    %2 = vector.load %arg5[%c0_3, %c0_4] : memref<1x256xf32, #tpu.memory_space<vmem>>, vector<1x256xf32>
    %c0_5 = arith.constant 0 : index
    %c0_6 = arith.constant 0 : index
    %3 = vector.load %arg1[%c0_5, %c0_6] : memref<8x4xf32, #tpu.memory_space<vmem>>, vector<8x4xf32>
    %4 = vector.shape_cast %3 : vector<8x4xf32> to vector<8x4x1xf32>
    %5 = vector.shape_cast %0 : vector<1x256xf32> to vector<1x1x256xf32>
    %6 = vector.broadcast %4 : vector<8x4x1xf32> to vector<8x4x256xf32>
    %7 = vector.broadcast %5 : vector<1x1x256xf32> to vector<8x4x256xf32>
    %8 = arith.mulf %6, %7 : vector<8x4x256xf32>
    %9 = vector.shape_cast %2 : vector<1x256xf32> to vector<1x1x256xf32>
    %10 = vector.broadcast %9 : vector<1x1x256xf32> to vector<8x4x256xf32>
    %11 = arith.addf %8, %10 : vector<8x4x256xf32>
    %c0_7 = arith.constant 0 : index
    %c0_8 = arith.constant 0 : index
    %c0_9 = arith.constant 0 : index
    %12 = vector.load %arg10[%c0_7, %c0_8, %c0_9] : memref<8x4x256xf32, #tpu.memory_space<vmem>>, vector<8x4x256xf32>
    tpu.vector_store %arg10[%c0_7, %c0_8, %c0_9], %11 {strides = array<i32>} : memref<8x4x256xf32, #tpu.memory_space<vmem>>, vector<8x4x256xf32>,
    %cst = arith.constant 0.000000e+00 : f32
    %13 = vector.broadcast %cst : f32 to vector<4x64xf32>
    %cst_10 = arith.constant 0.000000e+00 : f32
    %14 = vector.broadcast %cst_10 : f32 to vector<4x64xf32>
    %c0_i32 = arith.constant 0 : i32
    %15 = arith.index_cast %c0_i32 : i32 to index
    %c0_11 = arith.constant 0 : index
    %c0_12 = arith.constant 0 : index
    %16 = vector.load %arg10[%15, %c0_11, %c0_12] : memref<8x4x256xf32, #tpu.memory_space<vmem>>, vector<1x4x256xf32>
    %17 = vector.shape_cast %16 : vector<1x4x256xf32> to vector<4x256xf32>
    %18 = arith.truncf %13 : vector<4x64xf32> to vector<4x64xbf16>
    %cst_13 = arith.constant dense<0.000000e+00> : vector<4x256xf32>
    %19 = tpu.matmul %18, %1, %cst_13 {dimension_numbers = #tpu.dot_dimension_numbers<[1], [0], [0], [1], [0, 0, 1, 1], [], []>} : vector<4x64xbf16>, vector<64x256xbf16>, vector<4x256xf32> -> vector<4x256xf32>
    %20 = arith.addf %17, %19 : vector<4x256xf32>
    %21 = arith.negf %20 : vector<4x256xf32>
    %22 = math.exp %21 : vector<4x256xf32>
    %cst_14 = arith.constant 1.000000e+00 : f32
    %23 = vector.broadcast %cst_14 : f32 to vector<4x256xf32>
    %24 = arith.addf %23, %22 : vector<4x256xf32>
    %25 = arith.divf %23, %24 : vector<4x256xf32>
    %26 = vector.extract_strided_slice %25 {offsets = [0, 0], sizes = [4, 64], strides = [1, 1]} : vector<4x256xf32> to vector<4x64xf32>
    %27 = vector.extract_strided_slice %25 {offsets = [0, 64], sizes = [4, 64], strides = [1, 1]} : vector<4x256xf32> to vector<4x64xf32>
    %28 = vector.extract_strided_slice %25 {offsets = [0, 128], sizes = [4, 64], strides = [1, 1]} : vector<4x256xf32> to vector<4x64xf32>
    %29 = vector.extract_strided_slice %25 {offsets = [0, 192], sizes = [4, 64], strides = [1, 1]} : vector<4x256xf32> to vector<4x64xf32>
    %cst_15 = arith.constant 2.000000e+00 : f32
    %30 = vector.broadcast %cst_15 : f32 to vector<4x64xf32>
    %31 = arith.mulf %30, %29 : vector<4x64xf32>
    %cst_16 = arith.constant 1.000000e+00 : f32
    %32 = vector.broadcast %cst_16 : f32 to vector<4x64xf32>
    %33 = arith.subf %31, %32 : vector<4x64xf32>
    %34 = arith.mulf %27, %14 : vector<4x64xf32>
    %35 = arith.mulf %26, %33 : vector<4x64xf32>
    %36 = arith.addf %34, %35 : vector<4x64xf32>
    %37 = math.tanh %36 : vector<4x64xf32>
    %38 = arith.mulf %28, %37 : vector<4x64xf32>
    %c1_i32 = arith.constant 1 : i32
    %39 = arith.index_cast %c1_i32 : i32 to index
    %c0_17 = arith.constant 0 : index
    %c0_18 = arith.constant 0 : index
    %40 = vector.load %arg10[%39, %c0_17, %c0_18] : memref<8x4x256xf32, #tpu.memory_space<vmem>>, vector<1x4x256xf32>
    %41 = vector.shape_cast %40 : vector<1x4x256xf32> to vector<4x256xf32>
    %42 = arith.truncf %38 : vector<4x64xf32> to vector<4x64xbf16>
    %cst_19 = arith.constant dense<0.000000e+00> : vector<4x256xf32>
    %43 = tpu.matmul %42, %1, %cst_19 {dimension_numbers = #tpu.dot_dimension_numbers<[1], [0], [0], [1], [0, 0, 1, 1], [], []>} : vector<4x64xbf16>, vector<64x256xbf16>, vector<4x256xf32> -> vector<4x256xf32>
    %44 = arith.addf %41, %43 : vector<4x256xf32>
    %45 = arith.negf %44 : vector<4x256xf32>
    %46 = math.exp %45 : vector<4x256xf32>
    %cst_20 = arith.constant 1.000000e+00 : f32
    %47 = vector.broadcast %cst_20 : f32 to vector<4x256xf32>
    %48 = arith.addf %47, %46 : vector<4x256xf32>
    %49 = arith.divf %47, %48 : vector<4x256xf32>
    %50 = vector.extract_strided_slice %49 {offsets = [0, 0], sizes = [4, 64], strides = [1, 1]} : vector<4x256xf32> to vector<4x64xf32>
    %51 = vector.extract_strided_slice %49 {offsets = [0, 64], sizes = [4, 64], strides = [1, 1]} : vector<4x256xf32> to vector<4x64xf32>
    %52 = vector.extract_strided_slice %49 {offsets = [0, 128], sizes = [4, 64], strides = [1, 1]} : vector<4x256xf32> to vector<4x64xf32>
    %53 = vector.extract_strided_slice %49 {offsets = [0, 192], sizes = [4, 64], strides = [1, 1]} : vector<4x256xf32> to vector<4x64xf32>
    %cst_21 = arith.constant 2.000000e+00 : f32
    %54 = vector.broadcast %cst_21 : f32 to vector<4x64xf32>
    %55 = arith.mulf %54, %53 : vector<4x64xf32>
    %cst_22 = arith.constant 1.000000e+00 : f32
    %56 = vector.broadcast %cst_22 : f32 to vector<4x64xf32>
    %57 = arith.subf %55, %56 : vector<4x64xf32>
    %58 = arith.mulf %51, %36 : vector<4x64xf32>
    %59 = arith.mulf %50, %57 : vector<4x64xf32>
    %60 = arith.addf %58, %59 : vector<4x64xf32>
    %61 = math.tanh %60 : vector<4x64xf32>
    %62 = arith.mulf %52, %61 : vector<4x64xf32>
    %c2_i32 = arith.constant 2 : i32
    %63 = arith.index_cast %c2_i32 : i32 to index
    %c0_23 = arith.constant 0 : index
    %c0_24 = arith.constant 0 : index
    %64 = vector.load %arg10[%63, %c0_23, %c0_24] : memref<8x4x256xf32, #tpu.memory_space<vmem>>, vector<1x4x256xf32>
    %65 = vector.shape_cast %64 : vector<1x4x256xf32> to vector<4x256xf32>
    %66 = arith.truncf %62 : vector<4x64xf32> to vector<4x64xbf16>
    %cst_25 = arith.constant dense<0.000000e+00> : vector<4x256xf32>
    %67 = tpu.matmul %66, %1, %cst_25 {dimension_numbers = #tpu.dot_dimension_numbers<[1], [0], [0], [1], [0, 0, 1, 1], [], []>} : vector<4x64xbf16>, vector<64x256xbf16>, vector<4x256xf32> -> vector<4x256xf32>
    %68 = arith.addf %65, %67 : vector<4x256xf32>
    %69 = arith.negf %68 : vector<4x256xf32>
    %70 = math.exp %69 : vector<4x256xf32>
    %cst_26 = arith.constant 1.000000e+00 : f32
    %71 = vector.broadcast %cst_26 : f32 to vector<4x256xf32>
    %72 = arith.addf %71, %70 : vector<4x256xf32>
    %73 = arith.divf %71, %72 : vector<4x256xf32>
    %74 = vector.extract_strided_slice %73 {offsets = [0, 0], sizes = [4, 64], strides = [1, 1]} : vector<4x256xf32> to vector<4x64xf32>
    %75 = vector.extract_strided_slice %73 {offsets = [0, 64], sizes = [4, 64], strides = [1, 1]} : vector<4x256xf32> to vector<4x64xf32>
    %76 = vector.extract_strided_slice %73 {offsets = [0, 128], sizes = [4, 64], strides = [1, 1]} : vector<4x256xf32> to vector<4x64xf32>
    %77 = vector.extract_strided_slice %73 {offsets = [0, 192], sizes = [4, 64], strides = [1, 1]} : vector<4x256xf32> to vector<4x64xf32>
    %cst_27 = arith.constant 2.000000e+00 : f32
    %78 = vector.broadcast %cst_27 : f32 to vector<4x64xf32>
    %79 = arith.mulf %78, %77 : vector<4x64xf32>
    %cst_28 = arith.constant 1.000000e+00 : f32
    %80 = vector.broadcast %cst_28 : f32 to vector<4x64xf32>
    %81 = arith.subf %79, %80 : vector<4x64xf32>
    %82 = arith.mulf %75, %60 : vector<4x64xf32>
    %83 = arith.mulf %74, %81 : vector<4x64xf32>
    %84 = arith.addf %82, %83 : vector<4x64xf32>
    %85 = math.tanh %84 : vector<4x64xf32>
    %86 = arith.mulf %76, %85 : vector<4x64xf32>
    %c3_i32 = arith.constant 3 : i32
    %87 = arith.index_cast %c3_i32 : i32 to index
    %c0_29 = arith.constant 0 : index
    %c0_30 = arith.constant 0 : index
    %88 = vector.load %arg10[%87, %c0_29, %c0_30] : memref<8x4x256xf32, #tpu.memory_space<vmem>>, vector<1x4x256xf32>
    %89 = vector.shape_cast %88 : vector<1x4x256xf32> to vector<4x256xf32>
    %90 = arith.truncf %86 : vector<4x64xf32> to vector<4x64xbf16>
    %cst_31 = arith.constant dense<0.000000e+00> : vector<4x256xf32>
    %91 = tpu.matmul %90, %1, %cst_31 {dimension_numbers = #tpu.dot_dimension_numbers<[1], [0], [0], [1], [0, 0, 1, 1], [], []>} : vector<4x64xbf16>, vector<64x256xbf16>, vector<4x256xf32> -> vector<4x256xf32>
    %92 = arith.addf %89, %91 : vector<4x256xf32>
    %93 = arith.negf %92 : vector<4x256xf32>
    %94 = math.exp %93 : vector<4x256xf32>
    %cst_32 = arith.constant 1.000000e+00 : f32
    %95 = vector.broadcast %cst_32 : f32 to vector<4x256xf32>
    %96 = arith.addf %95, %94 : vector<4x256xf32>
    %97 = arith.divf %95, %96 : vector<4x256xf32>
    %98 = vector.extract_strided_slice %97 {offsets = [0, 0], sizes = [4, 64], strides = [1, 1]} : vector<4x256xf32> to vector<4x64xf32>
    %99 = vector.extract_strided_slice %97 {offsets = [0, 64], sizes = [4, 64], strides = [1, 1]} : vector<4x256xf32> to vector<4x64xf32>
    %100 = vector.extract_strided_slice %97 {offsets = [0, 128], sizes = [4, 64], strides = [1, 1]} : vector<4x256xf32> to vector<4x64xf32>
    %101 = vector.extract_strided_slice %97 {offsets = [0, 192], sizes = [4, 64], strides = [1, 1]} : vector<4x256xf32> to vector<4x64xf32>
    %cst_33 = arith.constant 2.000000e+00 : f32
    %102 = vector.broadcast %cst_33 : f32 to vector<4x64xf32>
    %103 = arith.mulf %102, %101 : vector<4x64xf32>
    %cst_34 = arith.constant 1.000000e+00 : f32
    %104 = vector.broadcast %cst_34 : f32 to vector<4x64xf32>
    %105 = arith.subf %103, %104 : vector<4x64xf32>
    %106 = arith.mulf %99, %84 : vector<4x64xf32>
    %107 = arith.mulf %98, %105 : vector<4x64xf32>
    %108 = arith.addf %106, %107 : vector<4x64xf32>
    %109 = math.tanh %108 : vector<4x64xf32>
    %110 = arith.mulf %100, %109 : vector<4x64xf32>
    %c4_i32 = arith.constant 4 : i32
    %111 = arith.index_cast %c4_i32 : i32 to index
    %c0_35 = arith.constant 0 : index
    %c0_36 = arith.constant 0 : index
    %112 = vector.load %arg10[%111, %c0_35, %c0_36] : memref<8x4x256xf32, #tpu.memory_space<vmem>>, vector<1x4x256xf32>
    %113 = vector.shape_cast %112 : vector<1x4x256xf32> to vector<4x256xf32>
    %114 = arith.truncf %110 : vector<4x64xf32> to vector<4x64xbf16>
    %cst_37 = arith.constant dense<0.000000e+00> : vector<4x256xf32>
    %115 = tpu.matmul %114, %1, %cst_37 {dimension_numbers = #tpu.dot_dimension_numbers<[1], [0], [0], [1], [0, 0, 1, 1], [], []>} : vector<4x64xbf16>, vector<64x256xbf16>, vector<4x256xf32> -> vector<4x256xf32>
    %116 = arith.addf %113, %115 : vector<4x256xf32>
    %117 = arith.negf %116 : vector<4x256xf32>
    %118 = math.exp %117 : vector<4x256xf32>
    %cst_38 = arith.constant 1.000000e+00 : f32
    %119 = vector.broadcast %cst_38 : f32 to vector<4x256xf32>
    %120 = arith.addf %119, %118 : vector<4x256xf32>
    %121 = arith.divf %119, %120 : vector<4x256xf32>
    %122 = vector.extract_strided_slice %121 {offsets = [0, 0], sizes = [4, 64], strides = [1, 1]} : vector<4x256xf32> to vector<4x64xf32>
    %123 = vector.extract_strided_slice %121 {offsets = [0, 64], sizes = [4, 64], strides = [1, 1]} : vector<4x256xf32> to vector<4x64xf32>
    %124 = vector.extract_strided_slice %121 {offsets = [0, 128], sizes = [4, 64], strides = [1, 1]} : vector<4x256xf32> to vector<4x64xf32>
    %125 = vector.extract_strided_slice %121 {offsets = [0, 192], sizes = [4, 64], strides = [1, 1]} : vector<4x256xf32> to vector<4x64xf32>
    %cst_39 = arith.constant 2.000000e+00 : f32
    %126 = vector.broadcast %cst_39 : f32 to vector<4x64xf32>
    %127 = arith.mulf %126, %125 : vector<4x64xf32>
    %cst_40 = arith.constant 1.000000e+00 : f32
    %128 = vector.broadcast %cst_40 : f32 to vector<4x64xf32>
    %129 = arith.subf %127, %128 : vector<4x64xf32>
    %130 = arith.mulf %123, %108 : vector<4x64xf32>
    %131 = arith.mulf %122, %129 : vector<4x64xf32>
    %132 = arith.addf %130, %131 : vector<4x64xf32>
    %133 = math.tanh %132 : vector<4x64xf32>
    %134 = arith.mulf %124, %133 : vector<4x64xf32>
    %c5_i32 = arith.constant 5 : i32
    %135 = arith.index_cast %c5_i32 : i32 to index
    %c0_41 = arith.constant 0 : index
    %c0_42 = arith.constant 0 : index
    %136 = vector.load %arg10[%135, %c0_41, %c0_42] : memref<8x4x256xf32, #tpu.memory_space<vmem>>, vector<1x4x256xf32>
    %137 = vector.shape_cast %136 : vector<1x4x256xf32> to vector<4x256xf32>
    %138 = arith.truncf %134 : vector<4x64xf32> to vector<4x64xbf16>
    %cst_43 = arith.constant dense<0.000000e+00> : vector<4x256xf32>
    %139 = tpu.matmul %138, %1, %cst_43 {dimension_numbers = #tpu.dot_dimension_numbers<[1], [0], [0], [1], [0, 0, 1, 1], [], []>} : vector<4x64xbf16>, vector<64x256xbf16>, vector<4x256xf32> -> vector<4x256xf32>
    %140 = arith.addf %137, %139 : vector<4x256xf32>
    %141 = arith.negf %140 : vector<4x256xf32>
    %142 = math.exp %141 : vector<4x256xf32>
    %cst_44 = arith.constant 1.000000e+00 : f32
    %143 = vector.broadcast %cst_44 : f32 to vector<4x256xf32>
    %144 = arith.addf %143, %142 : vector<4x256xf32>
    %145 = arith.divf %143, %144 : vector<4x256xf32>
    %146 = vector.extract_strided_slice %145 {offsets = [0, 0], sizes = [4, 64], strides = [1, 1]} : vector<4x256xf32> to vector<4x64xf32>
    %147 = vector.extract_strided_slice %145 {offsets = [0, 64], sizes = [4, 64], strides = [1, 1]} : vector<4x256xf32> to vector<4x64xf32>
    %148 = vector.extract_strided_slice %145 {offsets = [0, 128], sizes = [4, 64], strides = [1, 1]} : vector<4x256xf32> to vector<4x64xf32>
    %149 = vector.extract_strided_slice %145 {offsets = [0, 192], sizes = [4, 64], strides = [1, 1]} : vector<4x256xf32> to vector<4x64xf32>
    %cst_45 = arith.constant 2.000000e+00 : f32
    %150 = vector.broadcast %cst_45 : f32 to vector<4x64xf32>
    %151 = arith.mulf %150, %149 : vector<4x64xf32>
    %cst_46 = arith.constant 1.000000e+00 : f32
    %152 = vector.broadcast %cst_46 : f32 to vector<4x64xf32>
    %153 = arith.subf %151, %152 : vector<4x64xf32>
    %154 = arith.mulf %147, %132 : vector<4x64xf32>
    %155 = arith.mulf %146, %153 : vector<4x64xf32>
    %156 = arith.addf %154, %155 : vector<4x64xf32>
    %157 = math.tanh %156 : vector<4x64xf32>
    %158 = arith.mulf %148, %157 : vector<4x64xf32>
    %c6_i32 = arith.constant 6 : i32
    %159 = arith.index_cast %c6_i32 : i32 to index
    %c0_47 = arith.constant 0 : index
    %c0_48 = arith.constant 0 : index
    %160 = vector.load %arg10[%159, %c0_47, %c0_48] : memref<8x4x256xf32, #tpu.memory_space<vmem>>, vector<1x4x256xf32>
    %161 = vector.shape_cast %160 : vector<1x4x256xf32> to vector<4x256xf32>
    %162 = arith.truncf %158 : vector<4x64xf32> to vector<4x64xbf16>
    %cst_49 = arith.constant dense<0.000000e+00> : vector<4x256xf32>
    %163 = tpu.matmul %162, %1, %cst_49 {dimension_numbers = #tpu.dot_dimension_numbers<[1], [0], [0], [1], [0, 0, 1, 1], [], []>} : vector<4x64xbf16>, vector<64x256xbf16>, vector<4x256xf32> -> vector<4x256xf32>
    %164 = arith.addf %161, %163 : vector<4x256xf32>
    %165 = arith.negf %164 : vector<4x256xf32>
    %166 = math.exp %165 : vector<4x256xf32>
    %cst_50 = arith.constant 1.000000e+00 : f32
    %167 = vector.broadcast %cst_50 : f32 to vector<4x256xf32>
    %168 = arith.addf %167, %166 : vector<4x256xf32>
    %169 = arith.divf %167, %168 : vector<4x256xf32>
    %170 = vector.extract_strided_slice %169 {offsets = [0, 0], sizes = [4, 64], strides = [1, 1]} : vector<4x256xf32> to vector<4x64xf32>
    %171 = vector.extract_strided_slice %169 {offsets = [0, 64], sizes = [4, 64], strides = [1, 1]} : vector<4x256xf32> to vector<4x64xf32>
    %172 = vector.extract_strided_slice %169 {offsets = [0, 128], sizes = [4, 64], strides = [1, 1]} : vector<4x256xf32> to vector<4x64xf32>
    %173 = vector.extract_strided_slice %169 {offsets = [0, 192], sizes = [4, 64], strides = [1, 1]} : vector<4x256xf32> to vector<4x64xf32>
    %cst_51 = arith.constant 2.000000e+00 : f32
    %174 = vector.broadcast %cst_51 : f32 to vector<4x64xf32>
    %175 = arith.mulf %174, %173 : vector<4x64xf32>
    %cst_52 = arith.constant 1.000000e+00 : f32
    %176 = vector.broadcast %cst_52 : f32 to vector<4x64xf32>
    %177 = arith.subf %175, %176 : vector<4x64xf32>
    %178 = arith.mulf %171, %156 : vector<4x64xf32>
    %179 = arith.mulf %170, %177 : vector<4x64xf32>
    %180 = arith.addf %178, %179 : vector<4x64xf32>
    %181 = math.tanh %180 : vector<4x64xf32>
    %182 = arith.mulf %172, %181 : vector<4x64xf32>
    %c7_i32 = arith.constant 7 : i32
    %183 = arith.index_cast %c7_i32 : i32 to index
    %c0_53 = arith.constant 0 : index
    %c0_54 = arith.constant 0 : index
    %184 = vector.load %arg10[%183, %c0_53, %c0_54] : memref<8x4x256xf32, #tpu.memory_space<vmem>>, vector<1x4x256xf32>
    %185 = vector.shape_cast %184 : vector<1x4x256xf32> to vector<4x256xf32>
    %186 = arith.truncf %182 : vector<4x64xf32> to vector<4x64xbf16>
    %cst_55 = arith.constant dense<0.000000e+00> : vector<4x256xf32>
    %187 = tpu.matmul %186, %1, %cst_55 {dimension_numbers = #tpu.dot_dimension_numbers<[1], [0], [0], [1], [0, 0, 1, 1], [], []>} : vector<4x64xbf16>, vector<64x256xbf16>, vector<4x256xf32> -> vector<4x256xf32>
    %188 = arith.addf %185, %187 : vector<4x256xf32>
    %189 = arith.negf %188 : vector<4x256xf32>
    %190 = math.exp %189 : vector<4x256xf32>
    %cst_56 = arith.constant 1.000000e+00 : f32
    %191 = vector.broadcast %cst_56 : f32 to vector<4x256xf32>
    %192 = arith.addf %191, %190 : vector<4x256xf32>
    %193 = arith.divf %191, %192 : vector<4x256xf32>
    %194 = vector.extract_strided_slice %193 {offsets = [0, 0], sizes = [4, 64], strides = [1, 1]} : vector<4x256xf32> to vector<4x64xf32>
    %195 = vector.extract_strided_slice %193 {offsets = [0, 64], sizes = [4, 64], strides = [1, 1]} : vector<4x256xf32> to vector<4x64xf32>
    %196 = vector.extract_strided_slice %193 {offsets = [0, 128], sizes = [4, 64], strides = [1, 1]} : vector<4x256xf32> to vector<4x64xf32>
    %197 = vector.extract_strided_slice %193 {offsets = [0, 192], sizes = [4, 64], strides = [1, 1]} : vector<4x256xf32> to vector<4x64xf32>
    %cst_57 = arith.constant 2.000000e+00 : f32
    %198 = vector.broadcast %cst_57 : f32 to vector<4x64xf32>
    %199 = arith.mulf %198, %197 : vector<4x64xf32>
    %cst_58 = arith.constant 1.000000e+00 : f32
    %200 = vector.broadcast %cst_58 : f32 to vector<4x64xf32>
    %201 = arith.subf %199, %200 : vector<4x64xf32>
    %202 = arith.mulf %195, %180 : vector<4x64xf32>
    %203 = arith.mulf %194, %201 : vector<4x64xf32>
    %204 = arith.addf %202, %203 : vector<4x64xf32>
    %205 = math.tanh %204 : vector<4x64xf32>
    %206 = arith.mulf %196, %205 : vector<4x64xf32>
    %c8_i32 = arith.constant 8 : i32
    %207 = arith.truncf %206 : vector<4x64xf32> to vector<4x64xbf16>
    %c0_59 = arith.constant 0 : index
    %c0_60 = arith.constant 0 : index
    %208 = vector.load %arg6[%c0_59, %c0_60] : memref<64x64xbf16, #tpu.memory_space<vmem>>, vector<64x64xbf16>
    %cst_61 = arith.constant dense<0.000000e+00> : vector<4x64xf32>
    %209 = tpu.matmul %207, %208, %cst_61 {dimension_numbers = #tpu.dot_dimension_numbers<[1], [0], [0], [1], [0, 0, 1, 1], [], []>} : vector<4x64xbf16>, vector<64x64xbf16>, vector<4x64xf32> -> vector<4x64xf32>
    %c0_62 = arith.constant 0 : index
    %c0_63 = arith.constant 0 : index
    %210 = vector.load %arg2[%c0_62, %c0_63] : memref<4x64xf32, #tpu.memory_space<vmem>>, vector<4x64xf32>
    %211 = arith.addf %209, %210 : vector<4x64xf32>
    %cst_64 = arith.constant 0.000000e+00 : f32
    %212 = vector.broadcast %cst_64 : f32 to vector<4x64xf32>
    %213 = arith.maximumf %211, %212 : vector<4x64xf32>
    %c0_65 = arith.constant 0 : index
    %c0_66 = arith.constant 0 : index
    %214 = vector.load %arg7[%c0_65, %c0_66] : memref<1x64xf32, #tpu.memory_space<vmem>>, vector<1x64xf32>
    %cst_67 = arith.constant dense<0.000000e+00> : vector<1x4xf32>
    %215 = tpu.matmul %214, %213, %cst_67 {dimension_numbers = #tpu.dot_dimension_numbers<[1], [1], [0], [0], [0, 0, 1, 0], [], []>} : vector<1x64xf32>, vector<4x64xf32>, vector<1x4xf32> -> vector<1x4xf32>
    %c0_68 = arith.constant 0 : index
    %c0_69 = arith.constant 0 : index
    %216 = vector.load %arg8[%c0_68, %c0_69] : memref<1x1xf32, #tpu.memory_space<vmem>>, vector<1x1xf32>
    %217 = vector.broadcast %216 : vector<1x1xf32> to vector<1x4xf32>
    %218 = arith.addf %215, %217 : vector<1x4xf32>
    %c0_70 = arith.constant 0 : index
    %c0_71 = arith.constant 0 : index
    %219 = vector.load %arg9[%c0_70, %c0_71] : memref<1x4xf32, #tpu.memory_space<vmem>>, vector<1x4xf32>
    tpu.vector_store %arg9[%c0_70, %c0_71], %218 {strides = array<i32>} : memref<1x4xf32, #tpu.memory_space<vmem>>, vector<1x4xf32>,
    return
  }
  func.func @transform_0(%arg0: i32) -> (i32, i32) {
    %c0_i32 = arith.constant 0 : i32
    %c0_i32_0 = arith.constant 0 : i32
    return %c0_i32, %arg0 : i32, i32
  }
  func.func @transform_1(%arg0: i32) -> (i32, i32) {
    %c0_i32 = arith.constant 0 : i32
    %c0_i32_0 = arith.constant 0 : i32
    return %arg0, %c0_i32 : i32, i32
  }
  func.func @transform_2(%arg0: i32) -> (i32, i32) {
    %c0_i32 = arith.constant 0 : i32
    %c0_i32_0 = arith.constant 0 : i32
    %c0_i32_1 = arith.constant 0 : i32
    return %c0_i32, %c0_i32_0 : i32, i32
  }
  func.func @transform_3(%arg0: i32) -> (i32, i32) {
    %c0_i32 = arith.constant 0 : i32
    %c0_i32_0 = arith.constant 0 : i32
    %c0_i32_1 = arith.constant 0 : i32
    return %c0_i32, %c0_i32_0 : i32, i32
  }
  func.func @transform_4(%arg0: i32) -> (i32, i32) {
    %c0_i32 = arith.constant 0 : i32
    %c0_i32_0 = arith.constant 0 : i32
    %c0_i32_1 = arith.constant 0 : i32
    return %c0_i32, %c0_i32_0 : i32, i32
  }
  func.func @transform_5(%arg0: i32) -> (i32, i32) {
    %c0_i32 = arith.constant 0 : i32
    %c0_i32_0 = arith.constant 0 : i32
    %c0_i32_1 = arith.constant 0 : i32
    return %c0_i32, %c0_i32_0 : i32, i32
  }
  func.func @transform_6(%arg0: i32) -> (i32, i32) {
    %c0_i32 = arith.constant 0 : i32
    %c0_i32_0 = arith.constant 0 : i32
    %c0_i32_1 = arith.constant 0 : i32
    return %c0_i32, %c0_i32_0 : i32, i32
  }
  func.func @transform_7(%arg0: i32) -> (i32, i32) {
    %c0_i32 = arith.constant 0 : i32
    %c0_i32_0 = arith.constant 0 : i32
    %c0_i32_1 = arith.constant 0 : i32
    return %c0_i32, %c0_i32_0 : i32, i32
  }
  func.func @transform_8(%arg0: i32) -> (i32, i32) {
    %c0_i32 = arith.constant 0 : i32
    %c0_i32_0 = arith.constant 0 : i32
    return %c0_i32, %arg0 : i32, i32
  }
}

</mosaic_0001>

<llo_original>
// kernel: tpu_custom_call.1
$region0: #{tpu_custom_call.1}
  #allocation0 [shape = 'u32[]', space=smem, size = 0x4, offset = 0x4, fixed_abs, tag = 'smem constant byte address 0x4 - core index']
  #allocation1 [shape = 'u32[144,128]{1,0:T(1,128)}', space=vmem, size = 0x12000, scoped, tag = 'internal scratch']
  #allocation2 [shape = 'f32[8,4,256]{2,1,0:T(4,128)}', space=vmem, size = 0x8000, scoped, tag = 'scratch operand']
  #allocation3 [shape = 'f32[1,1]{1,0:T(1,128)S(1)}', space=vmem, size = 0x200, scoped, tag = 'scoped memory for tpu_custom_call.1']
  %s0 = inlined_call_operand.vmem [shape: f32[8,4], index: 0, kind: input, shape index: {}]
  %s1 = inlined_call_operand.vmem [shape: f32[4,64], index: 1, kind: input, shape index: {}]
  %s2 = inlined_call_operand.vmem [shape: f32[1,256], index: 2, kind: input, shape index: {}]
  %s3 = inlined_call_operand.hbm [shape: bf16[64,256], index: 3, kind: input, shape index: {}]
  %s4 = inlined_call_operand.vmem [shape: f32[1,256], index: 4, kind: input, shape index: {}]
  %s5 = inlined_call_operand.hbm [shape: bf16[64,64], index: 5, kind: input, shape index: {}]
  %s6 = inlined_call_operand.vmem [shape: f32[1,64], index: 6, kind: input, shape index: {}]
  %s7 = inlined_call_operand.<no memory space> [shape: f32[1,1], index: 7, kind: input, shape index: {}]
  %s8 = inlined_call_operand.hbm [shape: f32[1,4], index: 8, kind: output, shape index: {}]
  %s9 = sld [smem:[#allocation0]]
  $region50: #{tpu_custom_call.1} parent=0
    _
  %s11 = ssub.s32 1, %s9
  %s12 = scalar_select 0, %s11, %s9
  %v13 = vstv %s7
  %14 = vst [vmem:[#allocation3] sm:$0x1] %v13
  $region1: #{tpu_custom_call.1} parent=0
    #allocation4 [shape = 'u8[32768]{0}', space=vmem, size = 0x8000, scoped, tag = 'input window, operand 3, single buffered']
    #allocation5 [shape = 's32[1]{0}', space=sflag, size = 0x4, scoped, tag = 'scoped memory for tpu_custom_call.1']
    #allocation6 [shape = 's32[1]{0}', space=sflag, size = 0x4, scoped, tag = 'scoped memory for tpu_custom_call.1']
    #allocation7 [shape = 'u8[16384]{0}', space=vmem, size = 0x4000, scoped, tag = 'input window, operand 5, single buffered']
    #allocation8 [shape = 's32[1]{0}', space=sflag, size = 0x4, scoped, tag = 'scoped memory for tpu_custom_call.1']
    #allocation9 [shape = 'u8[512]{0}', space=vmem, size = 0x400, scoped, tag = 'output window, operand 0, single buffered']
    %15 = vsyncpa [#allocation5], 0
    %16 = vsyncpa [#allocation8], 0
    %17 = vsyncpa [#allocation6], 0
    // Predicated region
    $region2: #{tpu_custom_call.1} parent=1 // pred_check
      _
    $region3: #{tpu_custom_call.1} parent=1 // pred_check_branch
      %19 = sbr.rel (0) target = $region5
    $region4: #{tpu_custom_call.1} parent=1 // pred_region
      _
    $region5: #{tpu_custom_call.1} parent=1 // pred_fallthru
      _
    // Predicated region
    $region6: #{tpu_custom_call.1} parent=1 // pred_check
      _
    $region7: #{tpu_custom_call.1} parent=1 // pred_check_branch
      %21 = sbr.rel (0) target = $region9
    $region8: #{tpu_custom_call.1} parent=1 // pred_region
      _
    $region9: #{tpu_custom_call.1} parent=1 // pred_fallthru
      _
    // Predicated region
    $region10: #{tpu_custom_call.1} parent=1 // pred_check
      _
    $region11: #{tpu_custom_call.1} parent=1 // pred_check_branch
      %23 = sbr.rel (0) target = $region13
    $region12: #{tpu_custom_call.1} parent=1 // pred_region
      _
    $region13: #{tpu_custom_call.1} parent=1 // pred_fallthru
      _
    // Predicated region
    $region14: #{tpu_custom_call.1} parent=1 // pred_check
      _
    $region15: #{tpu_custom_call.1} parent=1 // pred_check_branch
      %25 = sbr.rel (0) target = $region17
    $region16: #{tpu_custom_call.1} parent=1 // pred_region
      %s27 = ssub.s32 1024, 1024
      %28 = vsyncadd [#allocation5], %s27
      %s29 = sshll.u32 [#allocation4], 4
      %s30 = int_to_ptr.vmem [resolvable:$true] %s29
      %35 = dma.hbm_to_vmem [thread:$0]  %s3, 1024, %s30, [#allocation5], 128, 128, 8
    $region17: #{tpu_custom_call.1} parent=1 // pred_fallthru
      _
    // Predicated region
    $region18: #{tpu_custom_call.1} parent=1 // pred_check
      _
    $region19: #{tpu_custom_call.1} parent=1 // pred_check_branch
      %37 = sbr.rel (0) target = $region21
    $region20: #{tpu_custom_call.1} parent=1 // pred_region
      _
    $region21: #{tpu_custom_call.1} parent=1 // pred_fallthru
      _
    // Predicated region
    $region22: #{tpu_custom_call.1} parent=1 // pred_check
      _
    $region23: #{tpu_custom_call.1} parent=1 // pred_check_branch
      %39 = sbr.rel (0) target = $region25
    $region24: #{tpu_custom_call.1} parent=1 // pred_region
      %s41 = ssub.s32 512, 512
      %42 = vsyncadd [#allocation8], %s41
      %s43 = sshll.u32 [#allocation7], 4
      %s44 = int_to_ptr.vmem [resolvable:$true] %s43
      %49 = dma.hbm_to_vmem [thread:$0]  %s5, 512, %s44, [#allocation8], 64, 64, 4
    $region25: #{tpu_custom_call.1} parent=1 // pred_fallthru
      _
    // Predicated region
    $region26: #{tpu_custom_call.1} parent=1 // pred_check
      _
    $region27: #{tpu_custom_call.1} parent=1 // pred_check_branch
      %51 = sbr.rel (0) target = $region29
    $region28: #{tpu_custom_call.1} parent=1 // pred_region
      _
    $region29: #{tpu_custom_call.1} parent=1 // pred_fallthru
      _
    // Predicated region
    $region30: #{tpu_custom_call.1} parent=1 // pred_check
      _
    $region31: #{tpu_custom_call.1} parent=1 // pred_check_branch
      %53 = sbr.rel (0) target = $region33
    $region32: #{tpu_custom_call.1} parent=1 // pred_region
      _
    $region33: #{tpu_custom_call.1} parent=1 // pred_fallthru
      _
    // Predicated region
    $region34: #{tpu_custom_call.1} parent=1 // pred_check
      _
    $region35: #{tpu_custom_call.1} parent=1 // pred_check_branch
      %55 = sbr.rel (0) target = $region37
    $region36: #{tpu_custom_call.1} parent=1 // pred_region
      %56 = dma.done [#allocation5], 1024
    $region37: #{tpu_custom_call.1} parent=1 // pred_fallthru
      _
    // Predicated region
    $region38: #{tpu_custom_call.1} parent=1 // pred_check
      _
    $region39: #{tpu_custom_call.1} parent=1 // pred_check_branch
      %58 = sbr.rel (0) target = $region41
    $region40: #{tpu_custom_call.1} parent=1 // pred_region
      %59 = dma.done [#allocation8], 512
    $region41: #{tpu_custom_call.1} parent=1 // pred_fallthru
      _
    %v61 = vld [vmem:[%s2] sm:$0x3]
    %v62 = vld [vmem:[#allocation4] sm:$0xff]
    %v63 = vld [vmem:[#allocation4 + $0x8] sm:$0xff]
    %v64 = vld [vmem:[#allocation4 + $0x10] sm:$0xff]
    %v65 = vld [vmem:[#allocation4 + $0x18] sm:$0xff]
    %v66 = vld [vmem:[#allocation4 + $0x20] sm:$0xff]
    %v67 = vld [vmem:[#allocation4 + $0x28] sm:$0xff]
    %v68 = vld [vmem:[#allocation4 + $0x30] sm:$0xff]
    %v69 = vld [vmem:[#allocation4 + $0x38] sm:$0xff]
    %v70 = vld [vmem:[%s4] sm:$0x3]
    %v71 = vld [vmem:[%s0] sm:$0xff]
    %v72 = vlaneseq
    %v73 = vshrl.u32 %v72, 7
    %v74 = vsub.s32 0, %v73
    %v75 = vrot.slane %v71, %v74
    %77 = vbcast.lane.b32.xlu0 %v75, 256
    %v78 = vpop.permute.xlu0 %77
    %v79 = vlaneseq
    %v80 = vshrl.u32 %v79, 7
    %v81 = vsub.s32 1, %v80
    %v82 = vrot.slane %v71, %v81
    %84 = vbcast.lane.b32.xlu0 %v82, 256
    %v85 = vpop.permute.xlu0 %84
    %v86 = vlaneseq
    %v87 = vshrl.u32 %v86, 7
    %v88 = vsub.s32 2, %v87
    %v89 = vrot.slane %v71, %v88
    %91 = vbcast.lane.b32.xlu0 %v89, 256
    %v92 = vpop.permute.xlu0 %91
    %v93 = vlaneseq
    %v94 = vshrl.u32 %v93, 7
    %v95 = vsub.s32 3, %v94
    %v96 = vrot.slane %v71, %v95
    %98 = vbcast.lane.b32.xlu0 %v96, 256
    %v99 = vpop.permute.xlu0 %98
    %v100 = vlaneseq
    %v101 = vshrl.u32 %v100, 7
    %v102 = vsub.s32 4, %v101
    %v103 = vrot.slane %v71, %v102
    %105 = vbcast.lane.b32.xlu0 %v103, 256
    %v106 = vpop.permute.xlu0 %105
    %v107 = vlaneseq
    %v108 = vshrl.u32 %v107, 7
    %v109 = vsub.s32 5, %v108
    %v110 = vrot.slane %v71, %v109
    %112 = vbcast.lane.b32.xlu0 %v110, 256
    %v113 = vpop.permute.xlu0 %112
    %v114 = vlaneseq
    %v115 = vshrl.u32 %v114, 7
    %v116 = vsub.s32 6, %v115
    %v117 = vrot.slane %v71, %v116
    %119 = vbcast.lane.b32.xlu0 %v117, 256
    %v120 = vpop.permute.xlu0 %119
    %v121 = vlaneseq
    %v122 = vshrl.u32 %v121, 7
    %v123 = vsub.s32 7, %v122
    %v124 = vrot.slane %v71, %v123
    %126 = vbcast.lane.b32.xlu0 %v124, 256
    %v127 = vpop.permute.xlu0 %126
    %v129 = vlaneseq
    %v130 = vshrl.u32 %v129, 7
    %v131 = vsub.s32 0, %v130
    %v132 = vrot.slane %v61, %v131
    %v133 = vlaneseq
    %v134 = vshrl.u32 %v133, 7
    %v135 = vsub.s32 1, %v134
    %v136 = vrot.slane %v61, %v135
    %v139 = vmul.f32 %v78, %v132
    %v140 = vmul.f32 %v78, %v136
    %v141 = vmul.f32 %v85, %v132
    %v142 = vmul.f32 %v85, %v136
    %v143 = vmul.f32 %v92, %v132
    %v144 = vmul.f32 %v92, %v136
    %v145 = vmul.f32 %v99, %v132
    %v146 = vmul.f32 %v99, %v136
    %v147 = vmul.f32 %v106, %v132
    %v148 = vmul.f32 %v106, %v136
    %v149 = vmul.f32 %v113, %v132
    %v150 = vmul.f32 %v113, %v136
    %v151 = vmul.f32 %v120, %v132
    %v152 = vmul.f32 %v120, %v136
    %v153 = vmul.f32 %v127, %v132
    %v154 = vmul.f32 %v127, %v136
    %v156 = vlaneseq
    %v157 = vshrl.u32 %v156, 7
    %v158 = vsub.s32 0, %v157
    %v159 = vrot.slane %v70, %v158
    %v160 = vlaneseq
    %v161 = vshrl.u32 %v160, 7
    %v162 = vsub.s32 1, %v161
    %v163 = vrot.slane %v70, %v162
    %v166 = vadd.f32 %v139, %v159
    %v167 = vadd.f32 %v140, %v163
    %v168 = vadd.f32 %v141, %v159
    %v169 = vadd.f32 %v142, %v163
    %v170 = vadd.f32 %v143, %v159
    %v171 = vadd.f32 %v144, %v163
    %v172 = vadd.f32 %v145, %v159
    %v173 = vadd.f32 %v146, %v163
    %v174 = vadd.f32 %v147, %v159
    %v175 = vadd.f32 %v148, %v163
    %v176 = vadd.f32 %v149, %v159
    %v177 = vadd.f32 %v150, %v163
    %v178 = vadd.f32 %v151, %v159
    %v179 = vadd.f32 %v152, %v163
    %v180 = vadd.f32 %v153, %v159
    %v181 = vadd.f32 %v154, %v163
    %v198 = vcombine.low %v166, %v167
    %v199 = vcombine.low %v168, %v169
    %v200 = vcombine.low %v170, %v171
    %v201 = vcombine.low %v172, %v173
    %v202 = vcombine.low %v174, %v175
    %v203 = vcombine.low %v176, %v177
    %v204 = vcombine.low %v178, %v179
    %v205 = vcombine.low %v180, %v181
    %214 = vst [vmem:[#allocation2] sm:$0xff] %v198
    %215 = vst [vmem:[#allocation2 + $0x8] sm:$0xff] %v199
    %216 = vst [vmem:[#allocation2 + $0x10] sm:$0xff] %v200
    %217 = vst [vmem:[#allocation2 + $0x18] sm:$0xff] %v201
    %218 = vst [vmem:[#allocation2 + $0x20] sm:$0xff] %v202
    %219 = vst [vmem:[#allocation2 + $0x28] sm:$0xff] %v203
    %220 = vst [vmem:[#allocation2 + $0x30] sm:$0xff] %v204
    %221 = vst [vmem:[#allocation2 + $0x38] sm:$0xff] %v205
    %v222 = vld [vmem:[#allocation2] sm:$0xff]
    %v231 = vunpack.c.l.b16 %v62
    %v232 = vunpack.c.h.b16 %v62
    %v233 = vunpack.c.l.b16 %v63
    %v234 = vunpack.c.h.b16 %v63
    %v235 = vunpack.c.l.b16 %v64
    %v236 = vunpack.c.h.b16 %v64
    %v237 = vunpack.c.l.b16 %v65
    %v238 = vunpack.c.h.b16 %v65
    %v239 = vunpack.c.l.b16 %v66
    %v240 = vunpack.c.h.b16 %v66
    %v241 = vunpack.c.l.b16 %v67
    %v242 = vunpack.c.h.b16 %v67
    %v243 = vunpack.c.l.b16 %v68
    %v244 = vunpack.c.h.b16 %v68
    %v245 = vunpack.c.l.b16 %v69
    %v246 = vunpack.c.h.b16 %v69
    %v247 = vpack.c.b16 %v233, %v231
    %v248 = vpack.c.b16 %v234, %v232
    %v249 = vpack.c.b16 %v237, %v235
    %v250 = vpack.c.b16 %v238, %v236
    %v251 = vpack.c.b16 %v241, %v239
    %v252 = vpack.c.b16 %v242, %v240
    %v253 = vpack.c.b16 %v245, %v243
    %v254 = vpack.c.b16 %v246, %v244
    %vm263 = vcmask 523264
    %v265 = vsel %vm263, 0, 0
    %267 = vmatprep.subr.bf16.mxu0 0
    %268 = vmatpush1.bf16.msra.mxu0 0
    %269 = vmatprep.subr.bf16.mxu0 0
    %270 = vmatpush1.bf16.msra.mxu0 0
    %271 = vmatprep.subr.bf16.mxu0 0
    %272 = vmatpush1.bf16.msra.mxu0 0
    %273 = vmatprep.subr.bf16.mxu0 0
    %274 = vmatpush1.bf16.msra.mxu0 0
    %275 = vmatprep.subr.bf16.mxu0 %v254
    %276 = vmatpush1.bf16.msra.mxu0 %v253
    %277 = vmatprep.subr.bf16.mxu0 %v252
    %278 = vmatpush1.bf16.msra.mxu0 %v251
    %279 = vmatprep.subr.bf16.mxu0 %v250
    %280 = vmatpush1.bf16.msra.mxu0 %v249
    %281 = vmatprep.subr.bf16.mxu0 %v248
    %282 = vmatpush1.bf16.msra.mxu0 %v247
    %283 = vmatprep.subr.bf16.mxu0 0
    %284 = vmatpush2.bf16.msra.mxu0 0
    %285 = vmatprep.subr.bf16.mxu0 0
    %286 = vmatpush2.bf16.msra.mxu0 0
    %287 = vmatprep.subr.bf16.mxu0 0
    %288 = vmatpush2.bf16.msra.mxu0 0
    %289 = vmatprep.subr.bf16.mxu0 0
    %290 = vmatpush2.bf16.msra.mxu0 0
    %291 = vmatprep.subr.bf16.mxu0 0
    %292 = vmatpush2.bf16.msra.mxu0 0
    %293 = vmatprep.subr.bf16.mxu0 0
    %294 = vmatpush2.bf16.msra.mxu0 0
    %295 = vmatprep.subr.bf16.mxu0 0
    %296 = vmatpush2.bf16.msra.mxu0 0
    %297 = vmatprep.subr.bf16.mxu0 0
    %298 = vmatpush2.bf16.msra.mxu0 0
    %299 = vmatprep.mubr.bf16.mxu0 0
    %300 = vmatmul.mubr.bf16.gmra.mxu0 %v265
    %v301 = vpop.f32.mrf.mxu0
    %v302 = vadd.f32 0.0, %v301
    %v303 = vpop.f32.mrf.mxu0
    %v304 = vadd.f32 0.0, %v303
    %v305 = vpop.f32.mrf.mxu0
    %v306 = vpop.f32.mrf.mxu0
    %307 = vdwg.mxu0
    %v310 = vcombine.low %v302, %v304
    %v312 = vadd.f32 %v222, %v310
    %v313 = vxor.u32 %v312, 2147483648
    %v314 = vmul.f32 %v313, 1.442695
    %v315 = vpow.pop %v314
    %v316 = vadd.f32 %v315, 1.0
    %v317 = vrcp.pop %v316
    %v318 = vmul.f32 1.0, %v317
    %320 = vrot.lane.b32.xlu0 %v318, 64
    %v321 = vpop.permute.xlu0 %320
    %v322 = vrot.slane %v321, 4
    %v324 = vmul.f32 %v322, 2.0
    %v325 = vsub.f32 %v324, 1.0
    %v326 = vmul.f32 %v318, 0.0
    %v327 = vmul.f32 %v318, %v325
    %329 = vrot.lane.b32.xlu0 %v327, 64
    %v330 = vpop.permute.xlu0 %329
    %v332 = vadd.f32 %v326, %v330
    %v333 = vtanh.pop %v332
    %v334 = vrot.slane %v318, 4
    %337 = vrot.lane.b32.xlu0 %v333, 64
    %v338 = vpop.permute.xlu0 %337
    %v340 = vmul.f32 %v334, %v338
    %s341 = scalar_lea.vmem [#allocation2], 8
    %v342 = vld [vmem:[%s341] sm:$0xff]
    %v343 = vpack.c.bf16 %v340, %v340
    %v345 = vsel %vm263, %v343, 0
    %347 = vmatprep.subr.bf16.mxu0 0
    %348 = vmatpush1.bf16.msra.mxu0 0
    %349 = vmatprep.subr.bf16.mxu0 0
    %350 = vmatpush1.bf16.msra.mxu0 0
    %351 = vmatprep.subr.bf16.mxu0 0
    %352 = vmatpush1.bf16.msra.mxu0 0
    %353 = vmatprep.subr.bf16.mxu0 0
    %354 = vmatpush1.bf16.msra.mxu0 0
    %355 = vmatprep.subr.bf16.mxu0 %v254
    %356 = vmatpush1.bf16.msra.mxu0 %v253
    %357 = vmatprep.subr.bf16.mxu0 %v252
    %358 = vmatpush1.bf16.msra.mxu0 %v251
    %359 = vmatprep.subr.bf16.mxu0 %v250
    %360 = vmatpush1.bf16.msra.mxu0 %v249
    %361 = vmatprep.subr.bf16.mxu0 %v248
    %362 = vmatpush1.bf16.msra.mxu0 %v247
    %363 = vmatprep.subr.bf16.mxu0 0
    %364 = vmatpush2.bf16.msra.mxu0 0
    %365 = vmatprep.subr.bf16.mxu0 0
    %366 = vmatpush2.bf16.msra.mxu0 0
    %367 = vmatprep.subr.bf16.mxu0 0
    %368 = vmatpush2.bf16.msra.mxu0 0
    %369 = vmatprep.subr.bf16.mxu0 0
    %370 = vmatpush2.bf16.msra.mxu0 0
    %371 = vmatprep.subr.bf16.mxu0 0
    %372 = vmatpush2.bf16.msra.mxu0 0
    %373 = vmatprep.subr.bf16.mxu0 0
    %374 = vmatpush2.bf16.msra.mxu0 0
    %375 = vmatprep.subr.bf16.mxu0 0
    %376 = vmatpush2.bf16.msra.mxu0 0
    %377 = vmatprep.subr.bf16.mxu0 0
    %378 = vmatpush2.bf16.msra.mxu0 0
    %379 = vmatprep.mubr.bf16.mxu0 0
    %380 = vmatmul.mubr.bf16.gmra.mxu0 %v345
    %v381 = vpop.f32.mrf.mxu0
    %v382 = vadd.f32 0.0, %v381
    %v383 = vpop.f32.mrf.mxu0
    %v384 = vadd.f32 0.0, %v383
    %v385 = vpop.f32.mrf.mxu0
    %v386 = vpop.f32.mrf.mxu0
    %387 = vdwg.mxu0
    %v390 = vcombine.low %v382, %v384
    %v392 = vadd.f32 %v342, %v390
    %v393 = vxor.u32 %v392, 2147483648
    %v394 = vmul.f32 %v393, 1.442695
    %v395 = vpow.pop %v394
    %v396 = vadd.f32 %v395, 1.0
    %v397 = vrcp.pop %v396
    %v398 = vmul.f32 1.0, %v397
    %400 = vrot.lane.b32.xlu0 %v398, 64
    %v401 = vpop.permute.xlu0 %400
    %v402 = vrot.slane %v401, 4
    %v404 = vmul.f32 %v402, 2.0
    %v405 = vsub.f32 %v404, 1.0
    %v406 = vmul.f32 %v398, %v332
    %v407 = vmul.f32 %v398, %v405
    %409 = vrot.lane.b32.xlu0 %v407, 64
    %v410 = vpop.permute.xlu0 %409
    %v412 = vadd.f32 %v406, %v410
    %v413 = vtanh.pop %v412
    %v414 = vrot.slane %v398, 4
    %417 = vrot.lane.b32.xlu0 %v413, 64
    %v418 = vpop.permute.xlu0 %417
    %v420 = vmul.f32 %v414, %v418
    %s421 = scalar_lea.vmem [#allocation2], 16
    %v422 = vld [vmem:[%s421] sm:$0xff]
    %v423 = vpack.c.bf16 %v420, %v420
    %v425 = vsel %vm263, %v423, 0
    %427 = vmatprep.subr.bf16.mxu0 0
    %428 = vmatpush1.bf16.msra.mxu0 0
    %429 = vmatprep.subr.bf16.mxu0 0
    %430 = vmatpush1.bf16.msra.mxu0 0
    %431 = vmatprep.subr.bf16.mxu0 0
    %432 = vmatpush1.bf16.msra.mxu0 0
    %433 = vmatprep.subr.bf16.mxu0 0
    %434 = vmatpush1.bf16.msra.mxu0 0
    %435 = vmatprep.subr.bf16.mxu0 %v254
    %436 = vmatpush1.bf16.msra.mxu0 %v253
    %437 = vmatprep.subr.bf16.mxu0 %v252
    %438 = vmatpush1.bf16.msra.mxu0 %v251
    %439 = vmatprep.subr.bf16.mxu0 %v250
    %440 = vmatpush1.bf16.msra.mxu0 %v249
    %441 = vmatprep.subr.bf16.mxu0 %v248
    %442 = vmatpush1.bf16.msra.mxu0 %v247
    %443 = vmatprep.subr.bf16.mxu0 0
    %444 = vmatpush2.bf16.msra.mxu0 0
    %445 = vmatprep.subr.bf16.mxu0 0
    %446 = vmatpush2.bf16.msra.mxu0 0
    %447 = vmatprep.subr.bf16.mxu0 0
    %448 = vmatpush2.bf16.msra.mxu0 0
    %449 = vmatprep.subr.bf16.mxu0 0
    %450 = vmatpush2.bf16.msra.mxu0 0
    %451 = vmatprep.subr.bf16.mxu0 0
    %452 = vmatpush2.bf16.msra.mxu0 0
    %453 = vmatprep.subr.bf16.mxu0 0
    %454 = vmatpush2.bf16.msra.mxu0 0
    %455 = vmatprep.subr.bf16.mxu0 0
    %456 = vmatpush2.bf16.msra.mxu0 0
    %457 = vmatprep.subr.bf16.mxu0 0
    %458 = vmatpush2.bf16.msra.mxu0 0
    %459 = vmatprep.mubr.bf16.mxu0 0
    %460 = vmatmul.mubr.bf16.gmra.mxu0 %v425
    %v461 = vpop.f32.mrf.mxu0
    %v462 = vadd.f32 0.0, %v461
    %v463 = vpop.f32.mrf.mxu0
    %v464 = vadd.f32 0.0, %v463
    %v465 = vpop.f32.mrf.mxu0
    %v466 = vpop.f32.mrf.mxu0
    %467 = vdwg.mxu0
    %v470 = vcombine.low %v462, %v464
    %v472 = vadd.f32 %v422, %v470
    %v473 = vxor.u32 %v472, 2147483648
    %v474 = vmul.f32 %v473, 1.442695
    %v475 = vpow.pop %v474
    %v476 = vadd.f32 %v475, 1.0
    %v477 = vrcp.pop %v476
    %v478 = vmul.f32 1.0, %v477
    %480 = vrot.lane.b32.xlu0 %v478, 64
    %v481 = vpop.permute.xlu0 %480
    %v482 = vrot.slane %v481, 4
    %v484 = vmul.f32 %v482, 2.0
    %v485 = vsub.f32 %v484, 1.0
    %v486 = vmul.f32 %v478, %v412
    %v487 = vmul.f32 %v478, %v485
    %489 = vrot.lane.b32.xlu0 %v487, 64
    %v490 = vpop.permute.xlu0 %489
    %v492 = vadd.f32 %v486, %v490
    %v493 = vtanh.pop %v492
    %v494 = vrot.slane %v478, 4
    %497 = vrot.lane.b32.xlu0 %v493, 64
    %v498 = vpop.permute.xlu0 %497
    %v500 = vmul.f32 %v494, %v498
    %s501 = scalar_lea.vmem [#allocation2], 24
    %v502 = vld [vmem:[%s501] sm:$0xff]
    %v503 = vpack.c.bf16 %v500, %v500
    %v505 = vsel %vm263, %v503, 0
    %507 = vmatprep.subr.bf16.mxu0 0
    %508 = vmatpush1.bf16.msra.mxu0 0
    %509 = vmatprep.subr.bf16.mxu0 0
    %510 = vmatpush1.bf16.msra.mxu0 0
    %511 = vmatprep.subr.bf16.mxu0 0
    %512 = vmatpush1.bf16.msra.mxu0 0
    %513 = vmatprep.subr.bf16.mxu0 0
    %514 = vmatpush1.bf16.msra.mxu0 0
    %515 = vmatprep.subr.bf16.mxu0 %v254
    %516 = vmatpush1.bf16.msra.mxu0 %v253
    %517 = vmatprep.subr.bf16.mxu0 %v252
    %518 = vmatpush1.bf16.msra.mxu0 %v251
    %519 = vmatprep.subr.bf16.mxu0 %v250
    %520 = vmatpush1.bf16.msra.mxu0 %v249
    %521 = vmatprep.subr.bf16.mxu0 %v248
    %522 = vmatpush1.bf16.msra.mxu0 %v247
    %523 = vmatprep.subr.bf16.mxu0 0
    %524 = vmatpush2.bf16.msra.mxu0 0
    %525 = vmatprep.subr.bf16.mxu0 0
    %526 = vmatpush2.bf16.msra.mxu0 0
    %527 = vmatprep.subr.bf16.mxu0 0
    %528 = vmatpush2.bf16.msra.mxu0 0
    %529 = vmatprep.subr.bf16.mxu0 0
    %530 = vmatpush2.bf16.msra.mxu0 0
    %531 = vmatprep.subr.bf16.mxu0 0
    %532 = vmatpush2.bf16.msra.mxu0 0
    %533 = vmatprep.subr.bf16.mxu0 0
    %534 = vmatpush2.bf16.msra.mxu0 0
    %535 = vmatprep.subr.bf16.mxu0 0
    %536 = vmatpush2.bf16.msra.mxu0 0
    %537 = vmatprep.subr.bf16.mxu0 0
    %538 = vmatpush2.bf16.msra.mxu0 0
    %539 = vmatprep.mubr.bf16.mxu0 0
    %540 = vmatmul.mubr.bf16.gmra.mxu0 %v505
    %v541 = vpop.f32.mrf.mxu0
    %v542 = vadd.f32 0.0, %v541
    %v543 = vpop.f32.mrf.mxu0
    %v544 = vadd.f32 0.0, %v543
    %v545 = vpop.f32.mrf.mxu0
    %v546 = vpop.f32.mrf.mxu0
    %547 = vdwg.mxu0
    %v550 = vcombine.low %v542, %v544
    %v552 = vadd.f32 %v502, %v550
    %v553 = vxor.u32 %v552, 2147483648
    %v554 = vmul.f32 %v553, 1.442695
    %v555 = vpow.pop %v554
    %v556 = vadd.f32 %v555, 1.0
    %v557 = vrcp.pop %v556
    %v558 = vmul.f32 1.0, %v557
    %560 = vrot.lane.b32.xlu0 %v558, 64
    %v561 = vpop.permute.xlu0 %560
    %v562 = vrot.slane %v561, 4
    %v564 = vmul.f32 %v562, 2.0
    %v565 = vsub.f32 %v564, 1.0
    %v566 = vmul.f32 %v558, %v492
    %v567 = vmul.f32 %v558, %v565
    %569 = vrot.lane.b32.xlu0 %v567, 64
    %v570 = vpop.permute.xlu0 %569
    %v572 = vadd.f32 %v566, %v570
    %v573 = vtanh.pop %v572
    %v574 = vrot.slane %v558, 4
    %577 = vrot.lane.b32.xlu0 %v573, 64
    %v578 = vpop.permute.xlu0 %577
    %v580 = vmul.f32 %v574, %v578
    %s581 = scalar_lea.vmem [#allocation2], 32
    %v582 = vld [vmem:[%s581] sm:$0xff]
    %v583 = vpack.c.bf16 %v580, %v580
    %v585 = vsel %vm263, %v583, 0
    %587 = vmatprep.subr.bf16.mxu0 0
    %588 = vmatpush1.bf16.msra.mxu0 0
    %589 = vmatprep.subr.bf16.mxu0 0
    %590 = vmatpush1.bf16.msra.mxu0 0
    %591 = vmatprep.subr.bf16.mxu0 0
    %592 = vmatpush1.bf16.msra.mxu0 0
    %593 = vmatprep.subr.bf16.mxu0 0
    %594 = vmatpush1.bf16.msra.mxu0 0
    %595 = vmatprep.subr.bf16.mxu0 %v254
    %596 = vmatpush1.bf16.msra.mxu0 %v253
    %597 = vmatprep.subr.bf16.mxu0 %v252
    %598 = vmatpush1.bf16.msra.mxu0 %v251
    %599 = vmatprep.subr.bf16.mxu0 %v250
    %600 = vmatpush1.bf16.msra.mxu0 %v249
    %601 = vmatprep.subr.bf16.mxu0 %v248
    %602 = vmatpush1.bf16.msra.mxu0 %v247
    %603 = vmatprep.subr.bf16.mxu0 0
    %604 = vmatpush2.bf16.msra.mxu0 0
    %605 = vmatprep.subr.bf16.mxu0 0
    %606 = vmatpush2.bf16.msra.mxu0 0
    %607 = vmatprep.subr.bf16.mxu0 0
    %608 = vmatpush2.bf16.msra.mxu0 0
    %609 = vmatprep.subr.bf16.mxu0 0
    %610 = vmatpush2.bf16.msra.mxu0 0
    %611 = vmatprep.subr.bf16.mxu0 0
    %612 = vmatpush2.bf16.msra.mxu0 0
    %613 = vmatprep.subr.bf16.mxu0 0
    %614 = vmatpush2.bf16.msra.mxu0 0
    %615 = vmatprep.subr.bf16.mxu0 0
    %616 = vmatpush2.bf16.msra.mxu0 0
    %617 = vmatprep.subr.bf16.mxu0 0
    %618 = vmatpush2.bf16.msra.mxu0 0
    %619 = vmatprep.mubr.bf16.mxu0 0
    %620 = vmatmul.mubr.bf16.gmra.mxu0 %v585
    %v621 = vpop.f32.mrf.mxu0
    %v622 = vadd.f32 0.0, %v621
    %v623 = vpop.f32.mrf.mxu0
    %v624 = vadd.f32 0.0, %v623
    %v625 = vpop.f32.mrf.mxu0
    %v626 = vpop.f32.mrf.mxu0
    %627 = vdwg.mxu0
    %v630 = vcombine.low %v622, %v624
    %v632 = vadd.f32 %v582, %v630
    %v633 = vxor.u32 %v632, 2147483648
    %v634 = vmul.f32 %v633, 1.442695
    %v635 = vpow.pop %v634
    %v636 = vadd.f32 %v635, 1.0
    %v637 = vrcp.pop %v636
    %v638 = vmul.f32 1.0, %v637
    %640 = vrot.lane.b32.xlu0 %v638, 64
    %v641 = vpop.permute.xlu0 %640
    %v642 = vrot.slane %v641, 4
    %v644 = vmul.f32 %v642, 2.0
    %v645 = vsub.f32 %v644, 1.0
    %v646 = vmul.f32 %v638, %v572
    %v647 = vmul.f32 %v638, %v645
    %649 = vrot.lane.b32.xlu0 %v647, 64
    %v650 = vpop.permute.xlu0 %649
    %v652 = vadd.f32 %v646, %v650
    %v653 = vtanh.pop %v652
    %v654 = vrot.slane %v638, 4
    %657 = vrot.lane.b32.xlu0 %v653, 64
    %v658 = vpop.permute.xlu0 %657
    %v660 = vmul.f32 %v654, %v658
    %s661 = scalar_lea.vmem [#allocation2], 40
    %v662 = vld [vmem:[%s661] sm:$0xff]
    %v663 = vpack.c.bf16 %v660, %v660
    %v665 = vsel %vm263, %v663, 0
    %667 = vmatprep.subr.bf16.mxu0 0
    %668 = vmatpush1.bf16.msra.mxu0 0
    %669 = vmatprep.subr.bf16.mxu0 0
    %670 = vmatpush1.bf16.msra.mxu0 0
    %671 = vmatprep.subr.bf16.mxu0 0
    %672 = vmatpush1.bf16.msra.mxu0 0
    %673 = vmatprep.subr.bf16.mxu0 0
    %674 = vmatpush1.bf16.msra.mxu0 0
    %675 = vmatprep.subr.bf16.mxu0 %v254
    %676 = vmatpush1.bf16.msra.mxu0 %v253
    %677 = vmatprep.subr.bf16.mxu0 %v252
    %678 = vmatpush1.bf16.msra.mxu0 %v251
    %679 = vmatprep.subr.bf16.mxu0 %v250
    %680 = vmatpush1.bf16.msra.mxu0 %v249
    %681 = vmatprep.subr.bf16.mxu0 %v248
    %682 = vmatpush1.bf16.msra.mxu0 %v247
    %683 = vmatprep.subr.bf16.mxu0 0
    %684 = vmatpush2.bf16.msra.mxu0 0
    %685 = vmatprep.subr.bf16.mxu0 0
    %686 = vmatpush2.bf16.msra.mxu0 0
    %687 = vmatprep.subr.bf16.mxu0 0
    %688 = vmatpush2.bf16.msra.mxu0 0
    %689 = vmatprep.subr.bf16.mxu0 0
    %690 = vmatpush2.bf16.msra.mxu0 0
    %691 = vmatprep.subr.bf16.mxu0 0
    %692 = vmatpush2.bf16.msra.mxu0 0
    %693 = vmatprep.subr.bf16.mxu0 0
    %694 = vmatpush2.bf16.msra.mxu0 0
    %695 = vmatprep.subr.bf16.mxu0 0
    %696 = vmatpush2.bf16.msra.mxu0 0
    %697 = vmatprep.subr.bf16.mxu0 0
    %698 = vmatpush2.bf16.msra.mxu0 0
    %699 = vmatprep.mubr.bf16.mxu0 0
    %700 = vmatmul.mubr.bf16.gmra.mxu0 %v665
    %v701 = vpop.f32.mrf.mxu0
    %v702 = vadd.f32 0.0, %v701
    %v703 = vpop.f32.mrf.mxu0
    %v704 = vadd.f32 0.0, %v703
    %v705 = vpop.f32.mrf.mxu0
    %v706 = vpop.f32.mrf.mxu0
    %707 = vdwg.mxu0
    %v710 = vcombine.low %v702, %v704
    %v712 = vadd.f32 %v662, %v710
    %v713 = vxor.u32 %v712, 2147483648
    %v714 = vmul.f32 %v713, 1.442695
    %v715 = vpow.pop %v714
    %v716 = vadd.f32 %v715, 1.0
    %v717 = vrcp.pop %v716
    %v718 = vmul.f32 1.0, %v717
    %720 = vrot.lane.b32.xlu0 %v718, 64
    %v721 = vpop.permute.xlu0 %720
    %v722 = vrot.slane %v721, 4
    %v724 = vmul.f32 %v722, 2.0
    %v725 = vsub.f32 %v724, 1.0
    %v726 = vmul.f32 %v718, %v652
    %v727 = vmul.f32 %v718, %v725
    %729 = vrot.lane.b32.xlu0 %v727, 64
    %v730 = vpop.permute.xlu0 %729
    %v732 = vadd.f32 %v726, %v730
    %v733 = vtanh.pop %v732
    %v734 = vrot.slane %v718, 4
    %737 = vrot.lane.b32.xlu0 %v733, 64
    %v738 = vpop.permute.xlu0 %737
    %v740 = vmul.f32 %v734, %v738
    %s741 = scalar_lea.vmem [#allocation2], 48
    %v742 = vld [vmem:[%s741] sm:$0xff]
    %v743 = vpack.c.bf16 %v740, %v740
    %v745 = vsel %vm263, %v743, 0
    %747 = vmatprep.subr.bf16.mxu0 0
    %748 = vmatpush1.bf16.msra.mxu0 0
    %749 = vmatprep.subr.bf16.mxu0 0
    %750 = vmatpush1.bf16.msra.mxu0 0
    %751 = vmatprep.subr.bf16.mxu0 0
    %752 = vmatpush1.bf16.msra.mxu0 0
    %753 = vmatprep.subr.bf16.mxu0 0
    %754 = vmatpush1.bf16.msra.mxu0 0
    %755 = vmatprep.subr.bf16.mxu0 %v254
    %756 = vmatpush1.bf16.msra.mxu0 %v253
    %757 = vmatprep.subr.bf16.mxu0 %v252
    %758 = vmatpush1.bf16.msra.mxu0 %v251
    %759 = vmatprep.subr.bf16.mxu0 %v250
    %760 = vmatpush1.bf16.msra.mxu0 %v249
    %761 = vmatprep.subr.bf16.mxu0 %v248
    %762 = vmatpush1.bf16.msra.mxu0 %v247
    %763 = vmatprep.subr.bf16.mxu0 0
    %764 = vmatpush2.bf16.msra.mxu0 0
    %765 = vmatprep.subr.bf16.mxu0 0
    %766 = vmatpush2.bf16.msra.mxu0 0
    %767 = vmatprep.subr.bf16.mxu0 0
    %768 = vmatpush2.bf16.msra.mxu0 0
    %769 = vmatprep.subr.bf16.mxu0 0
    %770 = vmatpush2.bf16.msra.mxu0 0
    %771 = vmatprep.subr.bf16.mxu0 0
    %772 = vmatpush2.bf16.msra.mxu0 0
    %773 = vmatprep.subr.bf16.mxu0 0
    %774 = vmatpush2.bf16.msra.mxu0 0
    %775 = vmatprep.subr.bf16.mxu0 0
    %776 = vmatpush2.bf16.msra.mxu0 0
    %777 = vmatprep.subr.bf16.mxu0 0
    %778 = vmatpush2.bf16.msra.mxu0 0
    %779 = vmatprep.mubr.bf16.mxu0 0
    %780 = vmatmul.mubr.bf16.gmra.mxu0 %v745
    %v781 = vpop.f32.mrf.mxu0
    %v782 = vadd.f32 0.0, %v781
    %v783 = vpop.f32.mrf.mxu0
    %v784 = vadd.f32 0.0, %v783
    %v785 = vpop.f32.mrf.mxu0
    %v786 = vpop.f32.mrf.mxu0
    %787 = vdwg.mxu0
    %v790 = vcombine.low %v782, %v784
    %v792 = vadd.f32 %v742, %v790
    %v793 = vxor.u32 %v792, 2147483648
    %v794 = vmul.f32 %v793, 1.442695
    %v795 = vpow.pop %v794
    %v796 = vadd.f32 %v795, 1.0
    %v797 = vrcp.pop %v796
    %v798 = vmul.f32 1.0, %v797
    %800 = vrot.lane.b32.xlu0 %v798, 64
    %v801 = vpop.permute.xlu0 %800
    %v802 = vrot.slane %v801, 4
    %v804 = vmul.f32 %v802, 2.0
    %v805 = vsub.f32 %v804, 1.0
    %v806 = vmul.f32 %v798, %v732
    %v807 = vmul.f32 %v798, %v805
    %809 = vrot.lane.b32.xlu0 %v807, 64
    %v810 = vpop.permute.xlu0 %809
    %v812 = vadd.f32 %v806, %v810
    %v813 = vtanh.pop %v812
    %v814 = vrot.slane %v798, 4
    %817 = vrot.lane.b32.xlu0 %v813, 64
    %v818 = vpop.permute.xlu0 %817
    %v820 = vmul.f32 %v814, %v818
    %s821 = scalar_lea.vmem [#allocation2], 56
    %v822 = vld [vmem:[%s821] sm:$0xff]
    %v823 = vpack.c.bf16 %v820, %v820
    %v825 = vsel %vm263, %v823, 0
    %827 = vmatprep.subr.bf16.mxu0 0
    %828 = vmatpush1.bf16.msra.mxu0 0
    %829 = vmatprep.subr.bf16.mxu0 0
    %830 = vmatpush1.bf16.msra.mxu0 0
    %831 = vmatprep.subr.bf16.mxu0 0
    %832 = vmatpush1.bf16.msra.mxu0 0
    %833 = vmatprep.subr.bf16.mxu0 0
    %834 = vmatpush1.bf16.msra.mxu0 0
    %835 = vmatprep.subr.bf16.mxu0 %v254
    %836 = vmatpush1.bf16.msra.mxu0 %v253
    %837 = vmatprep.subr.bf16.mxu0 %v252
    %838 = vmatpush1.bf16.msra.mxu0 %v251
    %839 = vmatprep.subr.bf16.mxu0 %v250
    %840 = vmatpush1.bf16.msra.mxu0 %v249
    %841 = vmatprep.subr.bf16.mxu0 %v248
    %842 = vmatpush1.bf16.msra.mxu0 %v247
    %843 = vmatprep.subr.bf16.mxu0 0
    %844 = vmatpush2.bf16.msra.mxu0 0
    %845 = vmatprep.subr.bf16.mxu0 0
    %846 = vmatpush2.bf16.msra.mxu0 0
    %847 = vmatprep.subr.bf16.mxu0 0
    %848 = vmatpush2.bf16.msra.mxu0 0
    %849 = vmatprep.subr.bf16.mxu0 0
    %850 = vmatpush2.bf16.msra.mxu0 0
    %851 = vmatprep.subr.bf16.mxu0 0
    %852 = vmatpush2.bf16.msra.mxu0 0
    %853 = vmatprep.subr.bf16.mxu0 0
    %854 = vmatpush2.bf16.msra.mxu0 0
    %855 = vmatprep.subr.bf16.mxu0 0
    %856 = vmatpush2.bf16.msra.mxu0 0
    %857 = vmatprep.subr.bf16.mxu0 0
    %858 = vmatpush2.bf16.msra.mxu0 0
    %859 = vmatprep.mubr.bf16.mxu0 0
    %860 = vmatmul.mubr.bf16.gmra.mxu0 %v825
    %v861 = vpop.f32.mrf.mxu0
    %v862 = vadd.f32 0.0, %v861
    %v863 = vpop.f32.mrf.mxu0
    %v864 = vadd.f32 0.0, %v863
    %v865 = vpop.f32.mrf.mxu0
    %v866 = vpop.f32.mrf.mxu0
    %867 = vdwg.mxu0
    %v870 = vcombine.low %v862, %v864
    %v872 = vadd.f32 %v822, %v870
    %v873 = vxor.u32 %v872, 2147483648
    %v874 = vmul.f32 %v873, 1.442695
    %v875 = vpow.pop %v874
    %v876 = vadd.f32 %v875, 1.0
    %v877 = vrcp.pop %v876
    %v878 = vmul.f32 1.0, %v877
    %880 = vrot.lane.b32.xlu0 %v878, 64
    %v881 = vpop.permute.xlu0 %880
    %v882 = vrot.slane %v881, 4
    %v884 = vmul.f32 %v882, 2.0
    %v885 = vsub.f32 %v884, 1.0
    %v886 = vmul.f32 %v878, %v812
    %v887 = vmul.f32 %v878, %v885
    %889 = vrot.lane.b32.xlu0 %v887, 64
    %v890 = vpop.permute.xlu0 %889
    %v892 = vadd.f32 %v886, %v890
    %v893 = vtanh.pop %v892
    %v894 = vrot.slane %v878, 4
    %897 = vrot.lane.b32.xlu0 %v893, 64
    %v898 = vpop.permute.xlu0 %897
    %v900 = vmul.f32 %v894, %v898
    %v901 = vpack.c.bf16 %v900, %v900
    %v902 = vld [vmem:[#allocation7] sm:$0xf]
    %v903 = vld [vmem:[#allocation7 + $0x4] sm:$0xf]
    %v904 = vld [vmem:[#allocation7 + $0x8] sm:$0xf]
    %v905 = vld [vmem:[#allocation7 + $0xc] sm:$0xf]
    %v906 = vld [vmem:[#allocation7 + $0x10] sm:$0xf]
    %v907 = vld [vmem:[#allocation7 + $0x14] sm:$0xf]
    %v908 = vld [vmem:[#allocation7 + $0x18] sm:$0xf]
    %v909 = vld [vmem:[#allocation7 + $0x1c] sm:$0xf]
    %v910 = vld [vmem:[%s1] sm:$0xf]
    %v919 = vunpack.c.l.b16 %v902
    %v920 = vunpack.c.l.b16 %v903
    %v921 = vunpack.c.l.b16 %v904
    %v922 = vunpack.c.l.b16 %v905
    %v923 = vunpack.c.l.b16 %v906
    %v924 = vunpack.c.l.b16 %v907
    %v925 = vunpack.c.l.b16 %v908
    %v926 = vunpack.c.l.b16 %v909
    %v927 = vpack.c.b16 %v920, %v919
    %v928 = vpack.c.b16 %v922, %v921
    %v929 = vpack.c.b16 %v924, %v923
    %v930 = vpack.c.b16 %v926, %v925
    %v936 = vsel %vm263, %v901, 0
    %938 = vmatprep.subr.bf16.mxu0 0
    %939 = vmatpush1.bf16.msra.mxu0 0
    %940 = vmatprep.subr.bf16.mxu0 0
    %941 = vmatpush1.bf16.msra.mxu0 0
    %942 = vmatprep.subr.bf16.mxu0 0
    %943 = vmatpush1.bf16.msra.mxu0 0
    %944 = vmatprep.subr.bf16.mxu0 0
    %945 = vmatpush1.bf16.msra.mxu0 0
    %946 = vmatprep.subr.bf16.mxu0 0
    %947 = vmatpush1.bf16.msra.mxu0 %v930
    %948 = vmatprep.subr.bf16.mxu0 0
    %949 = vmatpush1.bf16.msra.mxu0 %v929
    %950 = vmatprep.subr.bf16.mxu0 0
    %951 = vmatpush1.bf16.msra.mxu0 %v928
    %952 = vmatprep.subr.bf16.mxu0 0
    %953 = vmatpush1.bf16.msra.mxu0 %v927
    %954 = vmatprep.subr.bf16.mxu0 0
    %955 = vmatpush2.bf16.msra.mxu0 0
    %956 = vmatprep.subr.bf16.mxu0 0
    %957 = vmatpush2.bf16.msra.mxu0 0
    %958 = vmatprep.subr.bf16.mxu0 0
    %959 = vmatpush2.bf16.msra.mxu0 0
    %960 = vmatprep.subr.bf16.mxu0 0
    %961 = vmatpush2.bf16.msra.mxu0 0
    %962 = vmatprep.subr.bf16.mxu0 0
    %963 = vmatpush2.bf16.msra.mxu0 0
    %964 = vmatprep.subr.bf16.mxu0 0
    %965 = vmatpush2.bf16.msra.mxu0 0
    %966 = vmatprep.subr.bf16.mxu0 0
    %967 = vmatpush2.bf16.msra.mxu0 0
    %968 = vmatprep.subr.bf16.mxu0 0
    %969 = vmatpush2.bf16.msra.mxu0 0
    %970 = vmatprep.mubr.bf16.mxu0 0
    %971 = vmatmul.mubr.bf16.gmra.mxu0 %v936
    %v972 = vpop.f32.mrf.mxu0
    %v973 = vadd.f32 %v910, %v972
    %v974 = vpop.f32.mrf.mxu0
    %v975 = vpop.f32.mrf.mxu0
    %v976 = vpop.f32.mrf.mxu0
    %977 = vdwg.mxu0
    %v978 = vmax.f32 %v973, 0.0
    %v979 = vld [vmem:[%s6] sm:$0x1]
    %v980 = vld [vmem:[#allocation3] sm:$0x1]
    %982 = vset.pattern.permute.xlu0 0
    %983 = vperm.xlu0 %982, %v980
    %v984 = vpop.permute.xlu0 %983
    %v986 = vlaneseq
    %v987 = vshrl.u32 %v986, 7
    %v988 = vsub.s32 0, %v987
    %v989 = vrot.slane %v984, %v988
    %v991 = vsel %vm263, %v979, 0
    %v994 = vsel %vm263, %v978, 0
    %996 = vmatprep.subr.mxu0 0.0
    %997 = vmatpush1.xpose.msra.mxu0 0.0
    %998 = vmatprep.subr.mxu0 0.0
    %999 = vmatpush1.xpose.msra.mxu0 0.0
    %1000 = vmatprep.subr.mxu0 0.0
    %1001 = vmatpush1.xpose.msra.mxu0 0.0
    %1002 = vmatprep.subr.mxu0 0.0
    %1003 = vmatpush1.xpose.msra.mxu0 0.0
    %1004 = vmatprep.subr.mxu0 0.0
    %1005 = vmatpush1.xpose.msra.mxu0 0.0
    %1006 = vmatprep.subr.mxu0 0.0
    %1007 = vmatpush1.xpose.msra.mxu0 0.0
    %1008 = vmatprep.subr.mxu0 0.0
    %1009 = vmatpush1.xpose.msra.mxu0 0.0
    %1010 = vmatprep.subr.mxu0 0.0
    %1011 = vmatpush1.xpose.msra.mxu0 0.0
    %1012 = vmatprep.subr.mxu0 0.0
    %1013 = vmatpush1.xpose.msra.mxu0 0.0
    %1014 = vmatprep.subr.mxu0 0.0
    %1015 = vmatpush1.xpose.msra.mxu0 0.0
    %1016 = vmatprep.subr.mxu0 0.0
    %1017 = vmatpush1.xpose.msra.mxu0 0.0
    %1018 = vmatprep.subr.mxu0 0.0
    %1019 = vmatpush1.xpose.msra.mxu0 0.0
    %1020 = vmatprep.subr.mxu0 0.0
    %1021 = vmatpush1.xpose.msra.mxu0 0.0
    %1022 = vmatprep.subr.mxu0 0.0
    %1023 = vmatpush1.xpose.msra.mxu0 0.0
    %1024 = vmatprep.subr.mxu0 0.0
    %1025 = vmatpush1.xpose.msra.mxu0 0.0
    %1026 = vmatprep.subr.mxu0 0.0
    %1027 = vmatpush1.xpose.msra.mxu0 %v994
    %1028 = vmatprep.subr.mxu0 0.0
    %1029 = vmatpush2.xpose.msra.mxu0 0.0
    %1030 = vmatprep.subr.mxu0 0.0
    %1031 = vmatpush2.xpose.msra.mxu0 0.0
    %1032 = vmatprep.subr.mxu0 0.0
    %1033 = vmatpush2.xpose.msra.mxu0 0.0
    %1034 = vmatprep.subr.mxu0 0.0
    %1035 = vmatpush2.xpose.msra.mxu0 0.0
    %1036 = vmatprep.subr.mxu0 0.0
    %1037 = vmatpush2.xpose.msra.mxu0 0.0
    %1038 = vmatprep.subr.mxu0 0.0
    %1039 = vmatpush2.xpose.msra.mxu0 0.0
    %1040 = vmatprep.subr.mxu0 0.0
    %1041 = vmatpush2.xpose.msra.mxu0 0.0
    %1042 = vmatprep.subr.mxu0 0.0
    %1043 = vmatpush2.xpose.msra.mxu0 0.0
    %1044 = vmatprep.subr.mxu0 0.0
    %1045 = vmatpush2.xpose.msra.mxu0 0.0
    %1046 = vmatprep.subr.mxu0 0.0
    %1047 = vmatpush2.xpose.msra.mxu0 0.0
    %1048 = vmatprep.subr.mxu0 0.0
    %1049 = vmatpush2.xpose.msra.mxu0 0.0
    %1050 = vmatprep.subr.mxu0 0.0
    %1051 = vmatpush2.xpose.msra.mxu0 0.0
    %1052 = vmatprep.subr.mxu0 0.0
    %1053 = vmatpush2.xpose.msra.mxu0 0.0
    %1054 = vmatprep.subr.mxu0 0.0
    %1055 = vmatpush2.xpose.msra.mxu0 0.0
    %1056 = vmatprep.subr.mxu0 0.0
    %1057 = vmatpush2.xpose.msra.mxu0 0.0
    %1058 = vmatprep.subr.mxu0 0.0
    %1059 = vmatpush2.xpose.msra.mxu0 0.0
    %1060 = vmatprep.mubr.f32.mxu0 0.0
    %1061 = vmatmul.mubr.f32.gmra.mxu0 %v991
    %v1062 = vpop.f32.mrf.mxu0
    %v1063 = vadd.f32 %v989, %v1062
    %v1064 = vpop.f32.mrf.mxu0
    %1065 = vdwg.mxu0
    %vm1066 = vcmask 24576
    %1067 = vst.msk [vmem:[#allocation9] sm:$0x1] %vm1066, %v1063
    // Predicated region
    $region42: #{tpu_custom_call.1} parent=1 // pred_check
      _
    $region43: #{tpu_custom_call.1} parent=1 // pred_check_branch
      %1069 = sbr.rel (0) target = $region45
    $region44: #{tpu_custom_call.1} parent=1 // pred_region
      %s1071 = ssub.s32 16, 16
      %1072 = vsyncadd [#allocation6], %s1071
      %s1074 = sshll.u32 [#allocation9], 4
      %s1075 = int_to_ptr.vmem [resolvable:$true] %s1074
      %1077 = dma.vmem_to_hbm [thread:$0]  %s1075, 16, %s8, [#allocation6]
    $region45: #{tpu_custom_call.1} parent=1 // pred_fallthru
      _
    // Predicated region
    $region46: #{tpu_custom_call.1} parent=1 // pred_check
      _
    $region47: #{tpu_custom_call.1} parent=1 // pred_check_branch
      %1079 = sbr.rel (0) target = $region49
    $region48: #{tpu_custom_call.1} parent=1 // pred_region
      %1080 = dma.done [#allocation6], 16
    $region49: #{tpu_custom_call.1} parent=1 // pred_fallthru
      _
    %1081 = vsyncpa [#allocation5], 1
    %1082 = vsyncpa [#allocation8], 1
    %1083 = vsyncpa [#allocation6], 1

</llo_original>
